<compile_context>
chip_gen: v7x
topology: tpu7x:2x2x1
jax: 0.10.0
libtpu: 0.0.40
codegen_flags: <defaults>
</compile_context>

<pallas_src>
import functools
import math

import jax
import jax.numpy as jnp
from jax.experimental import pallas as pl
from jax.experimental.pallas import tpu as pltpu

# ---------------- configuration (small synthetic sizes) ----------------
HIDDEN_DIM = 32
NUM_HEADS = 4
NUM_LAYERS = 2
NUM_RADIAL = 16
CUTOFF = 10.0
FFN_DIM = 2 * HIDDEN_DIM
D_HEAD = HIDDEN_DIM // NUM_HEADS
SLAB = 128                  # lane-dense state slab: [0,H) features, [H,H+3) coords
APPROX_RECIPROCAL = True    # set False for tight parity validation vs. torch


def _esa3d_layer_kernel(eb_col_ref, eb_row_ref, state_ref, rbf_ref,
                        wr_ref, wq_ref, wk_ref, wvo_ref,
                        w1_ref, w2_ref, wg_ref,
                        out_ref, *, tq):
    f32 = jnp.float32
    bf16 = jnp.bfloat16
    eps = f32(1e-9)
    H = HIDDEN_DIM

    row0 = pl.multiple_of(pl.program_id(0) * tq, tq)

    # ---- key/value side: all rows, resident in VMEM -------------------------
    state = state_ref[...]                                   # [E, SLAB] f32
    x_full = state[:, :H]                                    # [E, H]
    rbf_b = rbf_ref[...]                                     # [E, R]  bf16
    xr_full = x_full + jnp.dot(rbf_b, wr_ref[...], preferred_element_type=f32)
    xr_full_b = xr_full.astype(bf16)
    # fused all-head projections (one matmul each instead of per-head N=8 ones)
    k_all = jnp.dot(xr_full_b, wk_ref[...], preferred_element_type=f32)   # [E, NH*DH]
    vproj = jnp.dot(xr_full_b, wvo_ref[...], preferred_element_type=f32)  # [E, NH*H]
    k_all_b = k_all.astype(bf16)
    vproj_b = vproj.astype(bf16)
    state_b = state.astype(bf16)

    # ---- query tile ----------------------------------------------------------
    state_t = state_ref[pl.ds(row0, tq), :]                  # [TQ, SLAB]
    x_t = state_t[:, :H]                                     # [TQ, H]
    rbf_t = rbf_ref[pl.ds(row0, tq), :]
    xr_t = x_t + jnp.dot(rbf_t, wr_ref[...], preferred_element_type=f32)
    # wq already carries the 1/sqrt(d_head) scale (folded host-side)
    q_all = jnp.dot(xr_t.astype(bf16), wq_ref[...], preferred_element_type=f32)

    # intra-block mask rebuilt in-kernel from [E] edge block ids (no O(E^2) input)
    eb_t = eb_col_ref[pl.ds(row0, tq), :]                    # [TQ, 1] int32
    eb_r = eb_row_ref[...]                                   # [1, E]  int32
    intra = (eb_t == eb_r).astype(f32)                       # [TQ, E]

    attn = jnp.zeros((tq, H), f32)
    p_sum = jnp.zeros_like(intra)
    for h in range(NUM_HEADS):                               # static unroll
        qh = q_all[:, h * D_HEAD:(h + 1) * D_HEAD].astype(bf16)     # [TQ, DH]
        kh = k_all_b[:, h * D_HEAD:(h + 1) * D_HEAD]                # [E, DH]
        s = jax.lax.dot_general(qh, kh,
                                dimension_numbers=(((1,), (1,)), ((), ())),
                                preferred_element_type=f32)          # [TQ, E]

        # one shared exp feeds both masked softmaxes
        m = jnp.max(s, axis=-1, keepdims=True)
        e = jnp.exp(s - m)
        e_intra = e * intra
        e_inter = e - e_intra                      # == e * (1 - intra)
        inv_intra = pl.reciprocal(
            jnp.sum(e_intra, axis=-1, keepdims=True) + eps, approx=APPROX_RECIPROCAL)
        inv_inter = pl.reciprocal(
            jnp.sum(e_inter, axis=-1, keepdims=True) + eps, approx=APPROX_RECIPROCAL)
        p = e_intra * inv_intra + e_inter * inv_inter                # [TQ, E]
        p_sum = p_sum + p

        # Wo folded into Wv host-side: attn += p @ (v_h @ Wo_h)
        attn = attn + jnp.dot(p.astype(bf16), vproj_b[:, h * H:(h + 1) * H],
                              preferred_element_type=f32)            # [TQ, H]

    # residual attention projection + residual SiLU FFN
    x_new = x_t + attn
    h1 = jnp.dot(x_new.astype(bf16), w1_ref[...], preferred_element_type=f32)
    h1 = h1 * jax.nn.sigmoid(h1)
    x_new = x_new + jnp.dot(h1.astype(bf16), w2_ref[...], preferred_element_type=f32)

    # equivariant coordinate update; coords live in lanes [H, H+3) of the slab,
    # zero lanes stay zero (mix of zeros is zero).
    gate = jnp.tanh(jnp.sum(x_new * wg_ref[...], axis=-1, keepdims=True))   # [TQ, 1]
    p_avg = p_sum * f32(1.0 / (2.0 * NUM_HEADS))
    mix = jnp.dot(p_avg.astype(bf16), state_b, preferred_element_type=f32)  # [TQ, SLAB]
    c_tail = state_t[:, H:]
    c_tail = c_tail + gate * (mix[:, H:] - c_tail)

    # single lane-dense (128-wide) store
    out_ref[...] = jnp.concatenate([x_new, c_tail], axis=-1)


def _choose_tq(E):
    """Query-tile rows: multiple of 8, divides E, >=2 tiles when possible."""
    if E % 8 != 0:
        return E                      # tiny/odd E: single full tile
    tq = max(8, min(256, E // 2))
    tq -= tq % 8
    while E % tq != 0:
        tq -= 8
    return tq


def _vmem_limit_bytes(E, tq):
    resident = (E * SLAB * 4          # state slab (full, resident)
                + E * NUM_RADIAL * 2  # rbf
                + E * SLAB * 4        # vproj value
                + 2 * E * HIDDEN_DIM * 4)   # xr_full + k_all
    per_tile = 8 * tq * E * 4 + 4 * tq * SLAB * 4
    total = 2 * (resident + per_tile) + (2 << 20)
    # cap at 64 MiB so the same request is valid on v7x physical VMEM
    return int(min(max(total, 32 << 20), 64 << 20))


def _esa3d_layer(state, eb_col, eb_row, rbf, layer_w, *, tq):
    E = state.shape[0]
    wr, wq, wk, wvo, w1, w2, wg = layer_w

    def full(shape):
        nd = len(shape)
        return pl.BlockSpec(shape, lambda i, _nd=nd: (0,) * _nd)

    return pl.pallas_call(
        functools.partial(_esa3d_layer_kernel, tq=tq),
        out_shape=jax.ShapeDtypeStruct((E, SLAB), jnp.float32),
        grid=(E // tq,),
        in_specs=[full(eb_col.shape), full(eb_row.shape), full(state.shape),
                  full(rbf.shape), full(wr.shape), full(wq.shape),
                  full(wk.shape), full(wvo.shape), full(w1.shape),
                  full(w2.shape), full(wg.shape)],
        out_specs=pl.BlockSpec((tq, SLAB), lambda i: (i, 0)),
        compiler_params=pltpu.CompilerParams(
            dimension_semantics=("parallel",),
            vmem_limit_bytes=_vmem_limit_bytes(E, tq)),
    )(eb_col, eb_row, state, rbf, wr, wq, wk, wvo, w1, w2, wg)


def enhanced_esa3d_encoder(edge_features, edge_coords, edge_index,
                           node_coords, block_ids, layer_params):
    """JAX/Pallas equivalent of EnhancedESA3DEncoder.forward."""
    E, H = edge_features.shape
    assert H == HIDDEN_DIM

    # block id of each edge = block of its source node.  The dense [E, E]
    # intra/inter masks of the torch reference are rebuilt per-tile in-kernel
    # from these ids (semantics identical to the dense-mask path).
    edge_blocks = block_ids[edge_index[0]].astype(jnp.int32)
    eb_col = edge_blocks.reshape(E, 1)
    eb_row = edge_blocks.reshape(1, E)

    src, dst = edge_index[0], edge_index[1]
    dist = jnp.linalg.norm(node_coords[dst] - node_coords[src],
                           axis=-1, keepdims=True)                     # [E, 1]
    centers = jnp.linspace(0.0, CUTOFF, NUM_RADIAL)[None, :]           # [1, R]
    rbf = jnp.exp(-jnp.square(dist - centers)).astype(jnp.bfloat16)    # [E, R]

    # lane-dense state slab: features in lanes [0, H), coords in [H, H+3)
    state = jnp.zeros((E, SLAB), jnp.float32)
    state = state.at[:, :H].set(edge_features.astype(jnp.float32))
    state = state.at[:, H:H + 3].set(edge_coords.astype(jnp.float32))

    tq = _choose_tq(E)
    for lw in layer_params:                       # one pallas_call per layer
        state = _esa3d_layer(state, eb_col, eb_row, rbf, lw, tq=tq)

    return state[:, :H], state[:, H:H + 3]


def prepare_params(params):
    """One-time host-side repack: bf16 weights, scale fold into Wq, Wo->Wv fold."""
    bf16 = jnp.bfloat16
    out = []
    for l in range(NUM_LAYERS):
        wq = (params["wq"][l] / math.sqrt(D_HEAD)).astype(bf16)        # scale fold
        wk = params["wk"][l].astype(bf16)
        wv = params["wv"][l]
        wo = params["wo"][l]
        # W_vo[h] = Wv_h @ Wo_h  ->  [H, NH*H] lane-concatenated per head
        wvo = jnp.concatenate(
            [wv[:, h * D_HEAD:(h + 1) * D_HEAD]
             @ wo[h * D_HEAD:(h + 1) * D_HEAD, :] for h in range(NUM_HEADS)],
            axis=1).astype(bf16)
        out.append((params["wr"][l].astype(bf16),
                    wq, wk, wvo,
                    params["w1"][l].astype(bf16),
                    params["w2"][l].astype(bf16),
                    params["wg"][l].reshape(1, HIDDEN_DIM).astype(jnp.float32)))
    return tuple(out)


def init_params(key):
    """Deterministic synthetic parameter init (stacked per layer)."""
    def lin(k, fan_in, shape):
        return (jax.random.normal(k, shape, jnp.float32) /
                jnp.sqrt(jnp.float32(fan_in)))
    ks = jax.random.split(key, 8)
    L, H, F, R = NUM_LAYERS, HIDDEN_DIM, FFN_DIM, NUM_RADIAL
    return {
        "wq": lin(ks[0], H, (L, H, H)),
        "wk": lin(ks[1], H, (L, H, H)),
        "wv": lin(ks[2], H, (L, H, H)),
        "wo": lin(ks[3], H, (L, H, H)),
        "w1": lin(ks[4], H, (L, H, F)),
        "w2": lin(ks[5], F, (L, F, H)),
        "wr": lin(ks[6], R, (L, R, H)),
        "wg": lin(ks[7], H, (L, H, 1)),
    }


if __name__ == "__main__":
    key = jax.random.PRNGKey(0)
    k_feat, k_coord, k_src, k_dst, k_param = jax.random.split(key, 5)

    N, E = 12, 16
    edge_features = jax.random.normal(k_feat, (E, HIDDEN_DIM), jnp.float32)
    node_coords = jax.random.uniform(k_coord, (N, 3), jnp.float32) * 5.0
    src = jax.random.randint(k_src, (E,), 0, N)
    dst = jax.random.randint(k_dst, (E,), 0, N)
    edge_index = jnp.stack([src, dst], axis=0)               # [2, E]
    edge_coords = node_coords[dst] - node_coords[src]        # [E, 3]
    block_ids = jnp.arange(N, dtype=jnp.int32) // 4          # 3 blocks

    params = init_params(k_param)
    prep = prepare_params(params)                            # one-time repack

    fwd = jax.jit(enhanced_esa3d_encoder)
    out_feats, out_coords = fwd(edge_features, edge_coords, edge_index,
                                node_coords, block_ids, prep)
    jax.block_until_ready((out_feats, out_coords))

    assert out_feats.shape == (E, HIDDEN_DIM)
    assert out_coords.shape == (E, 3)
    assert bool(jnp.all(jnp.isfinite(out_feats)))
    assert bool(jnp.all(jnp.isfinite(out_coords)))
    print("KERNEL_OK")
</pallas_src>

<mosaic_0001>
module attributes {stable_mosaic.version = 11 : i64} {
  func.func @_esa3d_layer_kernel(%arg0: i32, %arg1: memref<16x1xi32, #tpu.memory_space<vmem>>, %arg2: memref<1x16xi32, #tpu.memory_space<vmem>>, %arg3: memref<16x128xf32, #tpu.memory_space<vmem>>, %arg4: memref<16x16xbf16, #tpu.memory_space<vmem>>, %arg5: memref<16x32xbf16, #tpu.memory_space<vmem>>, %arg6: memref<32x32xbf16, #tpu.memory_space<vmem>>, %arg7: memref<32x32xbf16, #tpu.memory_space<vmem>>, %arg8: memref<32x128xbf16, #tpu.memory_space<vmem>>, %arg9: memref<32x64xbf16, #tpu.memory_space<vmem>>, %arg10: memref<64x32xbf16, #tpu.memory_space<vmem>>, %arg11: memref<1x32xf32, #tpu.memory_space<vmem>>, %arg12: memref<8x128xf32, #tpu.memory_space<vmem>>) attributes {dimension_semantics = [#tpu.dimension_semantics<parallel>], iteration_bounds = array<i64: 2>, scalar_prefetch = 0 : i64, scratch_operands = 0 : i64, tpu.core_type = #tpu.core_type<tc>, window_params = [{pipeline_mode = #tpu.pipeline_mode<synchronous>, transform_indices = @transform_0, window_bounds = array<i64: 16, 1>}, {pipeline_mode = #tpu.pipeline_mode<synchronous>, transform_indices = @transform_1, window_bounds = array<i64: 1, 16>}, {pipeline_mode = #tpu.pipeline_mode<synchronous>, transform_indices = @transform_2, window_bounds = array<i64: 16, 128>}, {pipeline_mode = #tpu.pipeline_mode<synchronous>, transform_indices = @transform_3, window_bounds = array<i64: 16, 16>}, {pipeline_mode = #tpu.pipeline_mode<synchronous>, transform_indices = @transform_4, window_bounds = array<i64: 16, 32>}, {pipeline_mode = #tpu.pipeline_mode<synchronous>, transform_indices = @transform_5, window_bounds = array<i64: 32, 32>}, {pipeline_mode = #tpu.pipeline_mode<synchronous>, transform_indices = @transform_6, window_bounds = array<i64: 32, 32>}, {pipeline_mode = #tpu.pipeline_mode<synchronous>, transform_indices = @transform_7, window_bounds = array<i64: 32, 128>}, {pipeline_mode = #tpu.pipeline_mode<synchronous>, transform_indices = @transform_8, window_bounds = array<i64: 32, 64>}, {pipeline_mode = #tpu.pipeline_mode<synchronous>, transform_indices = @transform_9, window_bounds = array<i64: 64, 32>}, {pipeline_mode = #tpu.pipeline_mode<synchronous>, transform_indices = @transform_10, window_bounds = array<i64: 1, 32>}, {transform_indices = @transform_11, window_bounds = array<i64: 8, 128>}]} {
    %c8_i32 = arith.constant 8 : i32
    %0 = arith.muli %arg0, %c8_i32 : i32
    %1 = tpu.assume_multiple %0, 8 : i32
    %c0 = arith.constant 0 : index
    %c0_0 = arith.constant 0 : index
    %2 = vector.load %arg3[%c0, %c0_0] : memref<16x128xf32, #tpu.memory_space<vmem>>, vector<16x128xf32>
    %3 = vector.extract_strided_slice %2 {offsets = [0, 0], sizes = [16, 32], strides = [1, 1]} : vector<16x128xf32> to vector<16x32xf32>
    %c0_1 = arith.constant 0 : index
    %c0_2 = arith.constant 0 : index
    %4 = vector.load %arg4[%c0_1, %c0_2] : memref<16x16xbf16, #tpu.memory_space<vmem>>, vector<16x16xbf16>
    %c0_3 = arith.constant 0 : index
    %c0_4 = arith.constant 0 : index
    %5 = vector.load %arg5[%c0_3, %c0_4] : memref<16x32xbf16, #tpu.memory_space<vmem>>, vector<16x32xbf16>
    %cst = arith.constant dense<0.000000e+00> : vector<16x32xf32>
    %6 = tpu.matmul %4, %5, %cst {dimension_numbers = #tpu.dot_dimension_numbers<[1], [0], [0], [1], [0, 0, 1, 1], [], []>} : vector<16x16xbf16>, vector<16x32xbf16>, vector<16x32xf32> -> vector<16x32xf32>
    %7 = arith.addf %3, %6 : vector<16x32xf32>
    %8 = arith.truncf %7 : vector<16x32xf32> to vector<16x32xbf16>
    %c0_5 = arith.constant 0 : index
    %c0_6 = arith.constant 0 : index
    %9 = vector.load %arg7[%c0_5, %c0_6] : memref<32x32xbf16, #tpu.memory_space<vmem>>, vector<32x32xbf16>
    %cst_7 = arith.constant dense<0.000000e+00> : vector<16x32xf32>
    %10 = tpu.matmul %8, %9, %cst_7 {dimension_numbers = #tpu.dot_dimension_numbers<[1], [0], [0], [1], [0, 0, 1, 1], [], []>} : vector<16x32xbf16>, vector<32x32xbf16>, vector<16x32xf32> -> vector<16x32xf32>
    %c0_8 = arith.constant 0 : index
    %c0_9 = arith.constant 0 : index
    %11 = vector.load %arg8[%c0_8, %c0_9] : memref<32x128xbf16, #tpu.memory_space<vmem>>, vector<32x128xbf16>
    %cst_10 = arith.constant dense<0.000000e+00> : vector<16x128xf32>
    %12 = tpu.matmul %8, %11, %cst_10 {dimension_numbers = #tpu.dot_dimension_numbers<[1], [0], [0], [1], [0, 0, 1, 1], [], []>} : vector<16x32xbf16>, vector<32x128xbf16>, vector<16x128xf32> -> vector<16x128xf32>
    %13 = arith.truncf %10 : vector<16x32xf32> to vector<16x32xbf16>
    %14 = arith.truncf %12 : vector<16x128xf32> to vector<16x128xbf16>
    %15 = arith.truncf %2 : vector<16x128xf32> to vector<16x128xbf16>
    %16 = arith.index_cast %1 : i32 to index
    %c0_11 = arith.constant 0 : index
    %17 = vector.load %arg3[%16, %c0_11] : memref<16x128xf32, #tpu.memory_space<vmem>>, vector<8x128xf32>
    %18 = vector.extract_strided_slice %17 {offsets = [0, 0], sizes = [8, 32], strides = [1, 1]} : vector<8x128xf32> to vector<8x32xf32>
    %19 = arith.index_cast %1 : i32 to index
    %c0_12 = arith.constant 0 : index
    %20 = vector.load %arg4[%19, %c0_12] : memref<16x16xbf16, #tpu.memory_space<vmem>>, vector<8x16xbf16>
    %c0_13 = arith.constant 0 : index
    %c0_14 = arith.constant 0 : index
    %21 = vector.load %arg5[%c0_13, %c0_14] : memref<16x32xbf16, #tpu.memory_space<vmem>>, vector<16x32xbf16>
    %cst_15 = arith.constant dense<0.000000e+00> : vector<8x32xf32>
    %22 = tpu.matmul %20, %21, %cst_15 {dimension_numbers = #tpu.dot_dimension_numbers<[1], [0], [0], [1], [0, 0, 1, 1], [], []>} : vector<8x16xbf16>, vector<16x32xbf16>, vector<8x32xf32> -> vector<8x32xf32>
    %23 = arith.addf %18, %22 : vector<8x32xf32>
    %24 = arith.truncf %23 : vector<8x32xf32> to vector<8x32xbf16>
    %c0_16 = arith.constant 0 : index
    %c0_17 = arith.constant 0 : index
    %25 = vector.load %arg6[%c0_16, %c0_17] : memref<32x32xbf16, #tpu.memory_space<vmem>>, vector<32x32xbf16>
    %cst_18 = arith.constant dense<0.000000e+00> : vector<8x32xf32>
    %26 = tpu.matmul %24, %25, %cst_18 {dimension_numbers = #tpu.dot_dimension_numbers<[1], [0], [0], [1], [0, 0, 1, 1], [], []>} : vector<8x32xbf16>, vector<32x32xbf16>, vector<8x32xf32> -> vector<8x32xf32>
    %27 = arith.index_cast %1 : i32 to index
    %c0_19 = arith.constant 0 : index
    %28 = vector.load %arg1[%27, %c0_19] : memref<16x1xi32, #tpu.memory_space<vmem>>, vector<8x1xi32>
    %c0_20 = arith.constant 0 : index
    %c0_21 = arith.constant 0 : index
    %29 = vector.load %arg2[%c0_20, %c0_21] : memref<1x16xi32, #tpu.memory_space<vmem>>, vector<1x16xi32>
    %30 = vector.broadcast %28 : vector<8x1xi32> to vector<8x16xi32>
    %31 = vector.broadcast %29 : vector<1x16xi32> to vector<8x16xi32>
    %32 = arith.cmpi eq, %30, %31 : vector<8x16xi32>
    %33 = arith.extui %32 : vector<8x16xi1> to vector<8x16xi32>
    %34 = arith.sitofp %33 : vector<8x16xi32> to vector<8x16xf32>
    %cst_22 = arith.constant 0.000000e+00 : f32
    %35 = vector.broadcast %cst_22 : f32 to vector<8x32xf32>
    %cst_23 = arith.constant 0.000000e+00 : f32
    %36 = vector.broadcast %cst_23 : f32 to vector<8x16xf32>
    %37 = vector.extract_strided_slice %26 {offsets = [0, 0], sizes = [8, 8], strides = [1, 1]} : vector<8x32xf32> to vector<8x8xf32>
    %38 = arith.truncf %37 : vector<8x8xf32> to vector<8x8xbf16>
    %39 = vector.extract_strided_slice %13 {offsets = [0, 0], sizes = [16, 8], strides = [1, 1]} : vector<16x32xbf16> to vector<16x8xbf16>
    %cst_24 = arith.constant dense<0.000000e+00> : vector<8x16xf32>
    %40 = tpu.matmul %38, %39, %cst_24 {dimension_numbers = #tpu.dot_dimension_numbers<[1], [1], [0], [0], [0, 0, 1, 0], [], []>} : vector<8x8xbf16>, vector<16x8xbf16>, vector<8x16xf32> -> vector<8x16xf32>
    %cst_25 = arith.constant dense<0xFF800000> : vector<8xf32>
    %41 = vector.multi_reduction <maximumf>, %40, %cst_25 [1] : vector<8x16xf32> to vector<8xf32>
    %42 = vector.shape_cast %41 : vector<8xf32> to vector<8x1xf32>
    %43 = vector.broadcast %42 : vector<8x1xf32> to vector<8x16xf32>
    %44 = arith.subf %40, %43 : vector<8x16xf32>
    %45 = math.exp %44 : vector<8x16xf32>
    %46 = arith.mulf %45, %34 : vector<8x16xf32>
    %47 = arith.subf %45, %46 : vector<8x16xf32>
    %cst_26 = arith.constant dense<0.000000e+00> : vector<8xf32>
    %48 = vector.multi_reduction <add>, %46, %cst_26 [1] : vector<8x16xf32> to vector<8xf32>
    %49 = vector.shape_cast %48 : vector<8xf32> to vector<8x1xf32>
    %cst_27 = arith.constant 9.99999971E-10 : f32
    %50 = vector.broadcast %cst_27 : f32 to vector<8x1xf32>
    %51 = arith.addf %49, %50 : vector<8x1xf32>
    %52 = tpu.reciprocal %51 {approx = true} : vector<8x1xf32> -> vector<8x1xf32>
    %cst_28 = arith.constant dense<0.000000e+00> : vector<8xf32>
    %53 = vector.multi_reduction <add>, %47, %cst_28 [1] : vector<8x16xf32> to vector<8xf32>
    %54 = vector.shape_cast %53 : vector<8xf32> to vector<8x1xf32>
    %cst_29 = arith.constant 9.99999971E-10 : f32
    %55 = vector.broadcast %cst_29 : f32 to vector<8x1xf32>
    %56 = arith.addf %54, %55 : vector<8x1xf32>
    %57 = tpu.reciprocal %56 {approx = true} : vector<8x1xf32> -> vector<8x1xf32>
    %58 = vector.broadcast %52 : vector<8x1xf32> to vector<8x16xf32>
    %59 = arith.mulf %46, %58 : vector<8x16xf32>
    %60 = vector.broadcast %57 : vector<8x1xf32> to vector<8x16xf32>
    %61 = arith.mulf %47, %60 : vector<8x16xf32>
    %62 = arith.addf %59, %61 : vector<8x16xf32>
    %63 = arith.addf %36, %62 : vector<8x16xf32>
    %64 = arith.truncf %62 : vector<8x16xf32> to vector<8x16xbf16>
    %65 = vector.extract_strided_slice %14 {offsets = [0, 0], sizes = [16, 32], strides = [1, 1]} : vector<16x128xbf16> to vector<16x32xbf16>
    %cst_30 = arith.constant dense<0.000000e+00> : vector<8x32xf32>
    %66 = tpu.matmul %64, %65, %cst_30 {dimension_numbers = #tpu.dot_dimension_numbers<[1], [0], [0], [1], [0, 0, 1, 1], [], []>} : vector<8x16xbf16>, vector<16x32xbf16>, vector<8x32xf32> -> vector<8x32xf32>
    %67 = arith.addf %35, %66 : vector<8x32xf32>
    %68 = vector.extract_strided_slice %26 {offsets = [0, 8], sizes = [8, 8], strides = [1, 1]} : vector<8x32xf32> to vector<8x8xf32>
    %69 = arith.truncf %68 : vector<8x8xf32> to vector<8x8xbf16>
    %70 = vector.extract_strided_slice %13 {offsets = [0, 8], sizes = [16, 8], strides = [1, 1]} : vector<16x32xbf16> to vector<16x8xbf16>
    %cst_31 = arith.constant dense<0.000000e+00> : vector<8x16xf32>
    %71 = tpu.matmul %69, %70, %cst_31 {dimension_numbers = #tpu.dot_dimension_numbers<[1], [1], [0], [0], [0, 0, 1, 0], [], []>} : vector<8x8xbf16>, vector<16x8xbf16>, vector<8x16xf32> -> vector<8x16xf32>
    %cst_32 = arith.constant dense<0xFF800000> : vector<8xf32>
    %72 = vector.multi_reduction <maximumf>, %71, %cst_32 [1] : vector<8x16xf32> to vector<8xf32>
    %73 = vector.shape_cast %72 : vector<8xf32> to vector<8x1xf32>
    %74 = vector.broadcast %73 : vector<8x1xf32> to vector<8x16xf32>
    %75 = arith.subf %71, %74 : vector<8x16xf32>
    %76 = math.exp %75 : vector<8x16xf32>
    %77 = arith.mulf %76, %34 : vector<8x16xf32>
    %78 = arith.subf %76, %77 : vector<8x16xf32>
    %cst_33 = arith.constant dense<0.000000e+00> : vector<8xf32>
    %79 = vector.multi_reduction <add>, %77, %cst_33 [1] : vector<8x16xf32> to vector<8xf32>
    %80 = vector.shape_cast %79 : vector<8xf32> to vector<8x1xf32>
    %cst_34 = arith.constant 9.99999971E-10 : f32
    %81 = vector.broadcast %cst_34 : f32 to vector<8x1xf32>
    %82 = arith.addf %80, %81 : vector<8x1xf32>
    %83 = tpu.reciprocal %82 {approx = true} : vector<8x1xf32> -> vector<8x1xf32>
    %cst_35 = arith.constant dense<0.000000e+00> : vector<8xf32>
    %84 = vector.multi_reduction <add>, %78, %cst_35 [1] : vector<8x16xf32> to vector<8xf32>
    %85 = vector.shape_cast %84 : vector<8xf32> to vector<8x1xf32>
    %cst_36 = arith.constant 9.99999971E-10 : f32
    %86 = vector.broadcast %cst_36 : f32 to vector<8x1xf32>
    %87 = arith.addf %85, %86 : vector<8x1xf32>
    %88 = tpu.reciprocal %87 {approx = true} : vector<8x1xf32> -> vector<8x1xf32>
    %89 = vector.broadcast %83 : vector<8x1xf32> to vector<8x16xf32>
    %90 = arith.mulf %77, %89 : vector<8x16xf32>
    %91 = vector.broadcast %88 : vector<8x1xf32> to vector<8x16xf32>
    %92 = arith.mulf %78, %91 : vector<8x16xf32>
    %93 = arith.addf %90, %92 : vector<8x16xf32>
    %94 = arith.addf %63, %93 : vector<8x16xf32>
    %95 = arith.truncf %93 : vector<8x16xf32> to vector<8x16xbf16>
    %96 = vector.extract_strided_slice %14 {offsets = [0, 32], sizes = [16, 32], strides = [1, 1]} : vector<16x128xbf16> to vector<16x32xbf16>
    %cst_37 = arith.constant dense<0.000000e+00> : vector<8x32xf32>
    %97 = tpu.matmul %95, %96, %cst_37 {dimension_numbers = #tpu.dot_dimension_numbers<[1], [0], [0], [1], [0, 0, 1, 1], [], []>} : vector<8x16xbf16>, vector<16x32xbf16>, vector<8x32xf32> -> vector<8x32xf32>
    %98 = arith.addf %67, %97 : vector<8x32xf32>
    %99 = vector.extract_strided_slice %26 {offsets = [0, 16], sizes = [8, 8], strides = [1, 1]} : vector<8x32xf32> to vector<8x8xf32>
    %100 = arith.truncf %99 : vector<8x8xf32> to vector<8x8xbf16>
    %101 = vector.extract_strided_slice %13 {offsets = [0, 16], sizes = [16, 8], strides = [1, 1]} : vector<16x32xbf16> to vector<16x8xbf16>
    %cst_38 = arith.constant dense<0.000000e+00> : vector<8x16xf32>
    %102 = tpu.matmul %100, %101, %cst_38 {dimension_numbers = #tpu.dot_dimension_numbers<[1], [1], [0], [0], [0, 0, 1, 0], [], []>} : vector<8x8xbf16>, vector<16x8xbf16>, vector<8x16xf32> -> vector<8x16xf32>
    %cst_39 = arith.constant dense<0xFF800000> : vector<8xf32>
    %103 = vector.multi_reduction <maximumf>, %102, %cst_39 [1] : vector<8x16xf32> to vector<8xf32>
    %104 = vector.shape_cast %103 : vector<8xf32> to vector<8x1xf32>
    %105 = vector.broadcast %104 : vector<8x1xf32> to vector<8x16xf32>
    %106 = arith.subf %102, %105 : vector<8x16xf32>
    %107 = math.exp %106 : vector<8x16xf32>
    %108 = arith.mulf %107, %34 : vector<8x16xf32>
    %109 = arith.subf %107, %108 : vector<8x16xf32>
    %cst_40 = arith.constant dense<0.000000e+00> : vector<8xf32>
    %110 = vector.multi_reduction <add>, %108, %cst_40 [1] : vector<8x16xf32> to vector<8xf32>
    %111 = vector.shape_cast %110 : vector<8xf32> to vector<8x1xf32>
    %cst_41 = arith.constant 9.99999971E-10 : f32
    %112 = vector.broadcast %cst_41 : f32 to vector<8x1xf32>
    %113 = arith.addf %111, %112 : vector<8x1xf32>
    %114 = tpu.reciprocal %113 {approx = true} : vector<8x1xf32> -> vector<8x1xf32>
    %cst_42 = arith.constant dense<0.000000e+00> : vector<8xf32>
    %115 = vector.multi_reduction <add>, %109, %cst_42 [1] : vector<8x16xf32> to vector<8xf32>
    %116 = vector.shape_cast %115 : vector<8xf32> to vector<8x1xf32>
    %cst_43 = arith.constant 9.99999971E-10 : f32
    %117 = vector.broadcast %cst_43 : f32 to vector<8x1xf32>
    %118 = arith.addf %116, %117 : vector<8x1xf32>
    %119 = tpu.reciprocal %118 {approx = true} : vector<8x1xf32> -> vector<8x1xf32>
    %120 = vector.broadcast %114 : vector<8x1xf32> to vector<8x16xf32>
    %121 = arith.mulf %108, %120 : vector<8x16xf32>
    %122 = vector.broadcast %119 : vector<8x1xf32> to vector<8x16xf32>
    %123 = arith.mulf %109, %122 : vector<8x16xf32>
    %124 = arith.addf %121, %123 : vector<8x16xf32>
    %125 = arith.addf %94, %124 : vector<8x16xf32>
    %126 = arith.truncf %124 : vector<8x16xf32> to vector<8x16xbf16>
    %127 = vector.extract_strided_slice %14 {offsets = [0, 64], sizes = [16, 32], strides = [1, 1]} : vector<16x128xbf16> to vector<16x32xbf16>
    %cst_44 = arith.constant dense<0.000000e+00> : vector<8x32xf32>
    %128 = tpu.matmul %126, %127, %cst_44 {dimension_numbers = #tpu.dot_dimension_numbers<[1], [0], [0], [1], [0, 0, 1, 1], [], []>} : vector<8x16xbf16>, vector<16x32xbf16>, vector<8x32xf32> -> vector<8x32xf32>
    %129 = arith.addf %98, %128 : vector<8x32xf32>
    %130 = vector.extract_strided_slice %26 {offsets = [0, 24], sizes = [8, 8], strides = [1, 1]} : vector<8x32xf32> to vector<8x8xf32>
    %131 = arith.truncf %130 : vector<8x8xf32> to vector<8x8xbf16>
    %132 = vector.extract_strided_slice %13 {offsets = [0, 24], sizes = [16, 8], strides = [1, 1]} : vector<16x32xbf16> to vector<16x8xbf16>
    %cst_45 = arith.constant dense<0.000000e+00> : vector<8x16xf32>
    %133 = tpu.matmul %131, %132, %cst_45 {dimension_numbers = #tpu.dot_dimension_numbers<[1], [1], [0], [0], [0, 0, 1, 0], [], []>} : vector<8x8xbf16>, vector<16x8xbf16>, vector<8x16xf32> -> vector<8x16xf32>
    %cst_46 = arith.constant dense<0xFF800000> : vector<8xf32>
    %134 = vector.multi_reduction <maximumf>, %133, %cst_46 [1] : vector<8x16xf32> to vector<8xf32>
    %135 = vector.shape_cast %134 : vector<8xf32> to vector<8x1xf32>
    %136 = vector.broadcast %135 : vector<8x1xf32> to vector<8x16xf32>
    %137 = arith.subf %133, %136 : vector<8x16xf32>
    %138 = math.exp %137 : vector<8x16xf32>
    %139 = arith.mulf %138, %34 : vector<8x16xf32>
    %140 = arith.subf %138, %139 : vector<8x16xf32>
    %cst_47 = arith.constant dense<0.000000e+00> : vector<8xf32>
    %141 = vector.multi_reduction <add>, %139, %cst_47 [1] : vector<8x16xf32> to vector<8xf32>
    %142 = vector.shape_cast %141 : vector<8xf32> to vector<8x1xf32>
    %cst_48 = arith.constant 9.99999971E-10 : f32
    %143 = vector.broadcast %cst_48 : f32 to vector<8x1xf32>
    %144 = arith.addf %142, %143 : vector<8x1xf32>
    %145 = tpu.reciprocal %144 {approx = true} : vector<8x1xf32> -> vector<8x1xf32>
    %cst_49 = arith.constant dense<0.000000e+00> : vector<8xf32>
    %146 = vector.multi_reduction <add>, %140, %cst_49 [1] : vector<8x16xf32> to vector<8xf32>
    %147 = vector.shape_cast %146 : vector<8xf32> to vector<8x1xf32>
    %cst_50 = arith.constant 9.99999971E-10 : f32
    %148 = vector.broadcast %cst_50 : f32 to vector<8x1xf32>
    %149 = arith.addf %147, %148 : vector<8x1xf32>
    %150 = tpu.reciprocal %149 {approx = true} : vector<8x1xf32> -> vector<8x1xf32>
    %151 = vector.broadcast %145 : vector<8x1xf32> to vector<8x16xf32>
    %152 = arith.mulf %139, %151 : vector<8x16xf32>
    %153 = vector.broadcast %150 : vector<8x1xf32> to vector<8x16xf32>
    %154 = arith.mulf %140, %153 : vector<8x16xf32>
    %155 = arith.addf %152, %154 : vector<8x16xf32>
    %156 = arith.addf %125, %155 : vector<8x16xf32>
    %157 = arith.truncf %155 : vector<8x16xf32> to vector<8x16xbf16>
    %158 = vector.extract_strided_slice %14 {offsets = [0, 96], sizes = [16, 32], strides = [1, 1]} : vector<16x128xbf16> to vector<16x32xbf16>
    %cst_51 = arith.constant dense<0.000000e+00> : vector<8x32xf32>
    %159 = tpu.matmul %157, %158, %cst_51 {dimension_numbers = #tpu.dot_dimension_numbers<[1], [0], [0], [1], [0, 0, 1, 1], [], []>} : vector<8x16xbf16>, vector<16x32xbf16>, vector<8x32xf32> -> vector<8x32xf32>
    %160 = arith.addf %129, %159 : vector<8x32xf32>
    %161 = arith.addf %18, %160 : vector<8x32xf32>
    %162 = arith.truncf %161 : vector<8x32xf32> to vector<8x32xbf16>
    %c0_52 = arith.constant 0 : index
    %c0_53 = arith.constant 0 : index
    %163 = vector.load %arg9[%c0_52, %c0_53] : memref<32x64xbf16, #tpu.memory_space<vmem>>, vector<32x64xbf16>
    %cst_54 = arith.constant dense<0.000000e+00> : vector<8x64xf32>
    %164 = tpu.matmul %162, %163, %cst_54 {dimension_numbers = #tpu.dot_dimension_numbers<[1], [0], [0], [1], [0, 0, 1, 1], [], []>} : vector<8x32xbf16>, vector<32x64xbf16>, vector<8x64xf32> -> vector<8x64xf32>
    %165 = arith.negf %164 : vector<8x64xf32>
    %166 = math.exp %165 : vector<8x64xf32>
    %cst_55 = arith.constant 1.000000e+00 : f32
    %167 = vector.broadcast %cst_55 : f32 to vector<8x64xf32>
    %168 = arith.addf %167, %166 : vector<8x64xf32>
    %169 = arith.divf %167, %168 : vector<8x64xf32>
    %170 = arith.mulf %164, %169 : vector<8x64xf32>
    %171 = arith.truncf %170 : vector<8x64xf32> to vector<8x64xbf16>
    %c0_56 = arith.constant 0 : index
    %c0_57 = arith.constant 0 : index
    %172 = vector.load %arg10[%c0_56, %c0_57] : memref<64x32xbf16, #tpu.memory_space<vmem>>, vector<64x32xbf16>
    %cst_58 = arith.constant dense<0.000000e+00> : vector<8x32xf32>
    %173 = tpu.matmul %171, %172, %cst_58 {dimension_numbers = #tpu.dot_dimension_numbers<[1], [0], [0], [1], [0, 0, 1, 1], [], []>} : vector<8x64xbf16>, vector<64x32xbf16>, vector<8x32xf32> -> vector<8x32xf32>
    %174 = arith.addf %161, %173 : vector<8x32xf32>
    %c0_59 = arith.constant 0 : index
    %c0_60 = arith.constant 0 : index
    %175 = vector.load %arg11[%c0_59, %c0_60] : memref<1x32xf32, #tpu.memory_space<vmem>>, vector<1x32xf32>
    %176 = vector.broadcast %175 : vector<1x32xf32> to vector<8x32xf32>
    %177 = arith.mulf %174, %176 : vector<8x32xf32>
    %cst_61 = arith.constant dense<0.000000e+00> : vector<8xf32>
    %178 = vector.multi_reduction <add>, %177, %cst_61 [1] : vector<8x32xf32> to vector<8xf32>
    %179 = vector.shape_cast %178 : vector<8xf32> to vector<8x1xf32>
    %180 = math.tanh %179 : vector<8x1xf32>
    %cst_62 = arith.constant 1.250000e-01 : f32
    %181 = vector.broadcast %cst_62 : f32 to vector<8x16xf32>
    %182 = arith.mulf %156, %181 : vector<8x16xf32>
    %183 = arith.truncf %182 : vector<8x16xf32> to vector<8x16xbf16>
    %cst_63 = arith.constant dense<0.000000e+00> : vector<8x128xf32>
    %184 = tpu.matmul %183, %15, %cst_63 {dimension_numbers = #tpu.dot_dimension_numbers<[1], [0], [0], [1], [0, 0, 1, 1], [], []>} : vector<8x16xbf16>, vector<16x128xbf16>, vector<8x128xf32> -> vector<8x128xf32>
    %185 = vector.extract_strided_slice %17 {offsets = [0, 32], sizes = [8, 96], strides = [1, 1]} : vector<8x128xf32> to vector<8x96xf32>
    %186 = vector.extract_strided_slice %184 {offsets = [0, 32], sizes = [8, 96], strides = [1, 1]} : vector<8x128xf32> to vector<8x96xf32>
    %187 = arith.subf %186, %185 : vector<8x96xf32>
    %188 = vector.broadcast %180 : vector<8x1xf32> to vector<8x96xf32>
    %189 = arith.mulf %188, %187 : vector<8x96xf32>
    %190 = arith.addf %185, %189 : vector<8x96xf32>
    %191 = tpu.concatenate %174, %190 in 1 : vector<8x32xf32>, vector<8x96xf32> -> vector<8x128xf32>
    %c0_64 = arith.constant 0 : index
    %c0_65 = arith.constant 0 : index
    %192 = vector.load %arg12[%c0_64, %c0_65] : memref<8x128xf32, #tpu.memory_space<vmem>>, vector<8x128xf32>
    tpu.vector_store %arg12[%c0_64, %c0_65], %191 {strides = array<i32>} : memref<8x128xf32, #tpu.memory_space<vmem>>, vector<8x128xf32>,
    return
  }
  func.func @transform_0(%arg0: i32) -> (i32, i32) {
    %c0_i32 = arith.constant 0 : i32
    %c0_i32_0 = arith.constant 0 : i32
    %c0_i32_1 = arith.constant 0 : i32
    return %c0_i32, %c0_i32_0 : i32, i32
  }
  func.func @transform_1(%arg0: i32) -> (i32, i32) {
    %c0_i32 = arith.constant 0 : i32
    %c0_i32_0 = arith.constant 0 : i32
    %c0_i32_1 = arith.constant 0 : i32
    return %c0_i32, %c0_i32_0 : i32, i32
  }
  func.func @transform_2(%arg0: i32) -> (i32, i32) {
    %c0_i32 = arith.constant 0 : i32
    %c0_i32_0 = arith.constant 0 : i32
    %c0_i32_1 = arith.constant 0 : i32
    return %c0_i32, %c0_i32_0 : i32, i32
  }
  func.func @transform_3(%arg0: i32) -> (i32, i32) {
    %c0_i32 = arith.constant 0 : i32
    %c0_i32_0 = arith.constant 0 : i32
    %c0_i32_1 = arith.constant 0 : i32
    return %c0_i32, %c0_i32_0 : i32, i32
  }
  func.func @transform_4(%arg0: i32) -> (i32, i32) {
    %c0_i32 = arith.constant 0 : i32
    %c0_i32_0 = arith.constant 0 : i32
    %c0_i32_1 = arith.constant 0 : i32
    return %c0_i32, %c0_i32_0 : i32, i32
  }
  func.func @transform_5(%arg0: i32) -> (i32, i32) {
    %c0_i32 = arith.constant 0 : i32
    %c0_i32_0 = arith.constant 0 : i32
    %c0_i32_1 = arith.constant 0 : i32
    return %c0_i32, %c0_i32_0 : i32, i32
  }
  func.func @transform_6(%arg0: i32) -> (i32, i32) {
    %c0_i32 = arith.constant 0 : i32
    %c0_i32_0 = arith.constant 0 : i32
    %c0_i32_1 = arith.constant 0 : i32
    return %c0_i32, %c0_i32_0 : i32, i32
  }
  func.func @transform_7(%arg0: i32) -> (i32, i32) {
    %c0_i32 = arith.constant 0 : i32
    %c0_i32_0 = arith.constant 0 : i32
    %c0_i32_1 = arith.constant 0 : i32
    return %c0_i32, %c0_i32_0 : i32, i32
  }
  func.func @transform_8(%arg0: i32) -> (i32, i32) {
    %c0_i32 = arith.constant 0 : i32
    %c0_i32_0 = arith.constant 0 : i32
    %c0_i32_1 = arith.constant 0 : i32
    return %c0_i32, %c0_i32_0 : i32, i32
  }
  func.func @transform_9(%arg0: i32) -> (i32, i32) {
    %c0_i32 = arith.constant 0 : i32
    %c0_i32_0 = arith.constant 0 : i32
    %c0_i32_1 = arith.constant 0 : i32
    return %c0_i32, %c0_i32_0 : i32, i32
  }
  func.func @transform_10(%arg0: i32) -> (i32, i32) {
    %c0_i32 = arith.constant 0 : i32
    %c0_i32_0 = arith.constant 0 : i32
    %c0_i32_1 = arith.constant 0 : i32
    return %c0_i32, %c0_i32_0 : i32, i32
  }
  func.func @transform_11(%arg0: i32) -> (i32, i32) {
    %c0_i32 = arith.constant 0 : i32
    %c0_i32_0 = arith.constant 0 : i32
    return %arg0, %c0_i32 : i32, i32
  }
}

</mosaic_0001>

<llo_original>
// kernel: enhanced_esa3d_encoder.2
$region0: #{enhanced_esa3d_encoder.2}
  #allocation0 [shape = 'u32[]', space=smem, size = 0x4, offset = 0x4, fixed_abs, tag = 'smem constant byte address 0x4 - core index']
  #allocation1 [shape = 'u32[144,128]{1,0:T(1,128)}', space=vmem, size = 0x12000, scoped, tag = 'internal scratch']
  %s0 = inlined_call_operand.vmem [shape: s32[16,1], index: 0, kind: input, shape index: {}]
  %s1 = inlined_call_operand.vmem [shape: s32[1,16], index: 1, kind: input, shape index: {}]
  %s2 = inlined_call_operand.vmem [shape: f32[16,128], index: 2, kind: input, shape index: {}]
  %s3 = inlined_call_operand.vmem [shape: bf16[16,16], index: 3, kind: input, shape index: {}]
  %s4 = inlined_call_operand.vmem [shape: bf16[16,32], index: 4, kind: input, shape index: {}]
  %s5 = inlined_call_operand.vmem [shape: bf16[32,32], index: 5, kind: input, shape index: {}]
  %s6 = inlined_call_operand.vmem [shape: bf16[32,32], index: 6, kind: input, shape index: {}]
  %s7 = inlined_call_operand.vmem [shape: bf16[32,128], index: 7, kind: input, shape index: {}]
  %s8 = inlined_call_operand.vmem [shape: bf16[32,64], index: 8, kind: input, shape index: {}]
  %s9 = inlined_call_operand.vmem [shape: bf16[64,32], index: 9, kind: input, shape index: {}]
  %s10 = inlined_call_operand.vmem [shape: f32[1,32], index: 10, kind: input, shape index: {}]
  %s11 = inlined_call_operand.vmem [shape: f32[16,128], index: 11, kind: output, shape index: {}]
  %s12 = sld [smem:[#allocation0]]
  $region77: #{enhanced_esa3d_encoder.2} parent=0
    _
  %s14 = ssub.s32 1, %s12
  %s15 = scalar_select 0, %s14, %s12
  loop: start=0, step=1, limit=4
  $region2: #{enhanced_esa3d_encoder.2} parent=0 // loop_pre_header
    _
  $region3: #{enhanced_esa3d_encoder.2} parent=0 // loop_header
    %s17 = sphi 0, %s21
    %p18 = scmp.ge.s32.totalorder %s17, 4
    %s25 = sphi 0, %s25
    %s27 = sphi 0, %s25
    %s28 = sphi 0, %s27
    %s42 = sphi 0, %s28
    %s46 = sphi 0, %s46
    %s48 = sphi 0, %s46
    %s49 = sphi 0, %s48
    %s63 = sphi 0, %s49
    %s67 = sphi 0, %s67
    %s69 = sphi 0, %s67
    %s70 = sphi 0, %s69
    %s84 = sphi 0, %s70
    %s88 = sphi 0, %s88
    %s90 = sphi 0, %s88
    %s91 = sphi 0, %s90
    %s105 = sphi 0, %s91
    %s109 = sphi 0, %s109
    %s111 = sphi 0, %s109
    %s112 = sphi 0, %s111
    %s126 = sphi 0, %s112
    %s130 = sphi 0, %s130
    %s132 = sphi 0, %s130
    %s133 = sphi 0, %s132
    %s147 = sphi 0, %s133
    %s151 = sphi 0, %s151
    %s153 = sphi 0, %s151
    %s154 = sphi 0, %s153
    %s168 = sphi 0, %s154
    %s172 = sphi 0, %s172
    %s174 = sphi 0, %s172
    %s175 = sphi 0, %s174
    %s189 = sphi 0, %s175
    %s193 = sphi 0, %s193
    %s195 = sphi 0, %s193
    %s196 = sphi 0, %s195
    %s210 = sphi 0, %s196
    %s214 = sphi 0, %s214
    %s216 = sphi 0, %s214
    %s217 = sphi 0, %s216
    %s231 = sphi 0, %s217
    %s235 = sphi 0, %s235
    %s237 = sphi 0, %s235
    %s238 = sphi 0, %s237
    %s252 = sphi 0, %s238
    %s258 = sphi 0, %s260
    %s261 = sphi 0, %s258
    %s262 = sphi 0, %s261
    %s278 = sphi 0, %s262
  $region4: #{enhanced_esa3d_encoder.2} parent=0 // loop_header_branch
    %20 = sbr.rel (%p18) target = $region8
  $region5: #{enhanced_esa3d_encoder.2} parent=0 // loop_body
    %s22 = ssub.s32 %s17, 1
    %s23 = ssub.s32 %s17, 2
    %s24 = sadd.s32 %s17, 1
    %s26 = sadd.s32 %s25, 1
    %p29 = scmp.eq.s32.totalorder %s17, 1
    %p30 = scmp.ne.s32.totalorder %s25, %s27
    %p31 = scmp.eq.s32.totalorder %s17, 0
    %p32 = por %p30, %p31
    %p33 = scmp.ne.s32.totalorder %s25, %s27
    %p34 = scmp.eq.s32.totalorder %s22, 1
    %p35 = por %p33, %p34
    %p36 = scmp.ne.s32.totalorder %s27, %s28
    %p37 = scmp.eq.s32.totalorder %s22, 0
    %p38 = por %p36, %p37
    %p39 = scmp.ne.s32.totalorder %s27, %s28
    %p40 = scmp.eq.s32.totalorder %s23, 1
    %p41 = por %p39, %p40
    %p43 = scmp.ne.s32.totalorder %s28, %s42
    %p44 = scmp.eq.s32.totalorder %s23, 0
    %p45 = por %p43, %p44
    %s47 = sadd.s32 %s46, 1
    %p50 = scmp.eq.s32.totalorder %s17, 1
    %p51 = scmp.ne.s32.totalorder %s46, %s48
    %p52 = scmp.eq.s32.totalorder %s17, 0
    %p53 = por %p51, %p52
    %p54 = scmp.ne.s32.totalorder %s46, %s48
    %p55 = scmp.eq.s32.totalorder %s22, 1
    %p56 = por %p54, %p55
    %p57 = scmp.ne.s32.totalorder %s48, %s49
    %p58 = scmp.eq.s32.totalorder %s22, 0
    %p59 = por %p57, %p58
    %p60 = scmp.ne.s32.totalorder %s48, %s49
    %p61 = scmp.eq.s32.totalorder %s23, 1
    %p62 = por %p60, %p61
    %p64 = scmp.ne.s32.totalorder %s49, %s63
    %p65 = scmp.eq.s32.totalorder %s23, 0
    %p66 = por %p64, %p65
    %s68 = sadd.s32 %s67, 1
    %p71 = scmp.eq.s32.totalorder %s17, 1
    %p72 = scmp.ne.s32.totalorder %s67, %s69
    %p73 = scmp.eq.s32.totalorder %s17, 0
    %p74 = por %p72, %p73
    %p75 = scmp.ne.s32.totalorder %s67, %s69
    %p76 = scmp.eq.s32.totalorder %s22, 1
    %p77 = por %p75, %p76
    %p78 = scmp.ne.s32.totalorder %s69, %s70
    %p79 = scmp.eq.s32.totalorder %s22, 0
    %p80 = por %p78, %p79
    %p81 = scmp.ne.s32.totalorder %s69, %s70
    %p82 = scmp.eq.s32.totalorder %s23, 1
    %p83 = por %p81, %p82
    %p85 = scmp.ne.s32.totalorder %s70, %s84
    %p86 = scmp.eq.s32.totalorder %s23, 0
    %p87 = por %p85, %p86
    %s89 = sadd.s32 %s88, 1
    %p92 = scmp.eq.s32.totalorder %s17, 1
    %p93 = scmp.ne.s32.totalorder %s88, %s90
    %p94 = scmp.eq.s32.totalorder %s17, 0
    %p95 = por %p93, %p94
    %p96 = scmp.ne.s32.totalorder %s88, %s90
    %p97 = scmp.eq.s32.totalorder %s22, 1
    %p98 = por %p96, %p97
    %p99 = scmp.ne.s32.totalorder %s90, %s91
    %p100 = scmp.eq.s32.totalorder %s22, 0
    %p101 = por %p99, %p100
    %p102 = scmp.ne.s32.totalorder %s90, %s91
    %p103 = scmp.eq.s32.totalorder %s23, 1
    %p104 = por %p102, %p103
    %p106 = scmp.ne.s32.totalorder %s91, %s105
    %p107 = scmp.eq.s32.totalorder %s23, 0
    %p108 = por %p106, %p107
    %s110 = sadd.s32 %s109, 1
    %p113 = scmp.eq.s32.totalorder %s17, 1
    %p114 = scmp.ne.s32.totalorder %s109, %s111
    %p115 = scmp.eq.s32.totalorder %s17, 0
    %p116 = por %p114, %p115
    %p117 = scmp.ne.s32.totalorder %s109, %s111
    %p118 = scmp.eq.s32.totalorder %s22, 1
    %p119 = por %p117, %p118
    %p120 = scmp.ne.s32.totalorder %s111, %s112
    %p121 = scmp.eq.s32.totalorder %s22, 0
    %p122 = por %p120, %p121
    %p123 = scmp.ne.s32.totalorder %s111, %s112
    %p124 = scmp.eq.s32.totalorder %s23, 1
    %p125 = por %p123, %p124
    %p127 = scmp.ne.s32.totalorder %s112, %s126
    %p128 = scmp.eq.s32.totalorder %s23, 0
    %p129 = por %p127, %p128
    %s131 = sadd.s32 %s130, 1
    %p134 = scmp.eq.s32.totalorder %s17, 1
    %p135 = scmp.ne.s32.totalorder %s130, %s132
    %p136 = scmp.eq.s32.totalorder %s17, 0
    %p137 = por %p135, %p136
    %p138 = scmp.ne.s32.totalorder %s130, %s132
    %p139 = scmp.eq.s32.totalorder %s22, 1
    %p140 = por %p138, %p139
    %p141 = scmp.ne.s32.totalorder %s132, %s133
    %p142 = scmp.eq.s32.totalorder %s22, 0
    %p143 = por %p141, %p142
    %p144 = scmp.ne.s32.totalorder %s132, %s133
    %p145 = scmp.eq.s32.totalorder %s23, 1
    %p146 = por %p144, %p145
    %p148 = scmp.ne.s32.totalorder %s133, %s147
    %p149 = scmp.eq.s32.totalorder %s23, 0
    %p150 = por %p148, %p149
    %s152 = sadd.s32 %s151, 1
    %p155 = scmp.eq.s32.totalorder %s17, 1
    %p156 = scmp.ne.s32.totalorder %s151, %s153
    %p157 = scmp.eq.s32.totalorder %s17, 0
    %p158 = por %p156, %p157
    %p159 = scmp.ne.s32.totalorder %s151, %s153
    %p160 = scmp.eq.s32.totalorder %s22, 1
    %p161 = por %p159, %p160
    %p162 = scmp.ne.s32.totalorder %s153, %s154
    %p163 = scmp.eq.s32.totalorder %s22, 0
    %p164 = por %p162, %p163
    %p165 = scmp.ne.s32.totalorder %s153, %s154
    %p166 = scmp.eq.s32.totalorder %s23, 1
    %p167 = por %p165, %p166
    %p169 = scmp.ne.s32.totalorder %s154, %s168
    %p170 = scmp.eq.s32.totalorder %s23, 0
    %p171 = por %p169, %p170
    %s173 = sadd.s32 %s172, 1
    %p176 = scmp.eq.s32.totalorder %s17, 1
    %p177 = scmp.ne.s32.totalorder %s172, %s174
    %p178 = scmp.eq.s32.totalorder %s17, 0
    %p179 = por %p177, %p178
    %p180 = scmp.ne.s32.totalorder %s172, %s174
    %p181 = scmp.eq.s32.totalorder %s22, 1
    %p182 = por %p180, %p181
    %p183 = scmp.ne.s32.totalorder %s174, %s175
    %p184 = scmp.eq.s32.totalorder %s22, 0
    %p185 = por %p183, %p184
    %p186 = scmp.ne.s32.totalorder %s174, %s175
    %p187 = scmp.eq.s32.totalorder %s23, 1
    %p188 = por %p186, %p187
    %p190 = scmp.ne.s32.totalorder %s175, %s189
    %p191 = scmp.eq.s32.totalorder %s23, 0
    %p192 = por %p190, %p191
    %s194 = sadd.s32 %s193, 1
    %p197 = scmp.eq.s32.totalorder %s17, 1
    %p198 = scmp.ne.s32.totalorder %s193, %s195
    %p199 = scmp.eq.s32.totalorder %s17, 0
    %p200 = por %p198, %p199
    %p201 = scmp.ne.s32.totalorder %s193, %s195
    %p202 = scmp.eq.s32.totalorder %s22, 1
    %p203 = por %p201, %p202
    %p204 = scmp.ne.s32.totalorder %s195, %s196
    %p205 = scmp.eq.s32.totalorder %s22, 0
    %p206 = por %p204, %p205
    %p207 = scmp.ne.s32.totalorder %s195, %s196
    %p208 = scmp.eq.s32.totalorder %s23, 1
    %p209 = por %p207, %p208
    %p211 = scmp.ne.s32.totalorder %s196, %s210
    %p212 = scmp.eq.s32.totalorder %s23, 0
    %p213 = por %p211, %p212
    %s215 = sadd.s32 %s214, 1
    %p218 = scmp.eq.s32.totalorder %s17, 1
    %p219 = scmp.ne.s32.totalorder %s214, %s216
    %p220 = scmp.eq.s32.totalorder %s17, 0
    %p221 = por %p219, %p220
    %p222 = scmp.ne.s32.totalorder %s214, %s216
    %p223 = scmp.eq.s32.totalorder %s22, 1
    %p224 = por %p222, %p223
    %p225 = scmp.ne.s32.totalorder %s216, %s217
    %p226 = scmp.eq.s32.totalorder %s22, 0
    %p227 = por %p225, %p226
    %p228 = scmp.ne.s32.totalorder %s216, %s217
    %p229 = scmp.eq.s32.totalorder %s23, 1
    %p230 = por %p228, %p229
    %p232 = scmp.ne.s32.totalorder %s217, %s231
    %p233 = scmp.eq.s32.totalorder %s23, 0
    %p234 = por %p232, %p233
    %s236 = sadd.s32 %s235, 1
    %p239 = scmp.eq.s32.totalorder %s17, 1
    %p240 = scmp.ne.s32.totalorder %s235, %s237
    %p241 = scmp.eq.s32.totalorder %s17, 0
    %p242 = por %p240, %p241
    %p243 = scmp.ne.s32.totalorder %s235, %s237
    %p244 = scmp.eq.s32.totalorder %s22, 1
    %p245 = por %p243, %p244
    %p246 = scmp.ne.s32.totalorder %s237, %s238
    %p247 = scmp.eq.s32.totalorder %s22, 0
    %p248 = por %p246, %p247
    %p249 = scmp.ne.s32.totalorder %s237, %s238
    %p250 = scmp.eq.s32.totalorder %s23, 1
    %p251 = por %p249, %p250
    %p253 = scmp.ne.s32.totalorder %s238, %s252
    %p254 = scmp.eq.s32.totalorder %s23, 0
    %p255 = por %p253, %p254
    %s256 = ssub.s32 %s17, %s24
    %p257 = scmp.eq.s32.totalorder %s256, 0
    %s259 = sadd.s32 %s258, 1
    %s260 = scalar_select %p257, %s258, %s259
    %p263 = pneg %p257
    %p264 = scmp.eq.s32.totalorder %s17, 1
    %p265 = por %p263, %p264
    %p266 = scmp.ne.s32.totalorder %s258, %s261
    %p267 = scmp.eq.s32.totalorder %s17, 0
    %p268 = por %p266, %p267
    %p269 = scmp.ne.s32.totalorder %s258, %s261
    %p270 = scmp.eq.s32.totalorder %s22, 1
    %p271 = por %p269, %p270
    %p272 = scmp.ne.s32.totalorder %s261, %s262
    %p273 = scmp.eq.s32.totalorder %s22, 0
    %p274 = por %p272, %p273
    %p275 = scmp.ne.s32.totalorder %s261, %s262
    %p276 = scmp.eq.s32.totalorder %s23, 1
    %p277 = por %p275, %p276
    %p279 = scmp.ne.s32.totalorder %s262, %s278
    %p280 = scmp.eq.s32.totalorder %s23, 0
    %p281 = por %p279, %p280
    %p282 = scmp.le.s32.totalorder 1, %s17
    %p283 = scmp.lt.s32.totalorder %s17, 3
    %p284 = pnand %p282, %p283
    %p285 = pneg %p284
    // Predicated region
    $region9: #{enhanced_esa3d_encoder.2} parent=5 // pred_check
      _
    $region10: #{enhanced_esa3d_encoder.2} parent=5 // pred_check_branch
      %287 = sbr.rel (%p284) target = $region12
    $region11: #{enhanced_esa3d_encoder.2} parent=5 // pred_region
      %s288 = ssub.s32 %s17, 1
      // Predicated region
      $region13: #{enhanced_esa3d_encoder.2} parent=11 // pred_check
        %p289 = pneg %p38
      $region14: #{enhanced_esa3d_encoder.2} parent=11 // pred_check_branch
        %291 = sbr.rel (%p289) target = $region16
      $region15: #{enhanced_esa3d_encoder.2} parent=11 // pred_region
        _
      $region16: #{enhanced_esa3d_encoder.2} parent=11 // pred_fallthru
        _
      // Predicated region
      $region17: #{enhanced_esa3d_encoder.2} parent=11 // pred_check
        %p292 = pneg %p59
      $region18: #{enhanced_esa3d_encoder.2} parent=11 // pred_check_branch
        %294 = sbr.rel (%p292) target = $region20
      $region19: #{enhanced_esa3d_encoder.2} parent=11 // pred_region
        _
      $region20: #{enhanced_esa3d_encoder.2} parent=11 // pred_fallthru
        _
      // Predicated region
      $region21: #{enhanced_esa3d_encoder.2} parent=11 // pred_check
        %p295 = pneg %p80
      $region22: #{enhanced_esa3d_encoder.2} parent=11 // pred_check_branch
        %297 = sbr.rel (%p295) target = $region24
      $region23: #{enhanced_esa3d_encoder.2} parent=11 // pred_region
        _
      $region24: #{enhanced_esa3d_encoder.2} parent=11 // pred_fallthru
        _
      // Predicated region
      $region25: #{enhanced_esa3d_encoder.2} parent=11 // pred_check
        %p298 = pneg %p101
      $region26: #{enhanced_esa3d_encoder.2} parent=11 // pred_check_branch
        %300 = sbr.rel (%p298) target = $region28
      $region27: #{enhanced_esa3d_encoder.2} parent=11 // pred_region
        _
      $region28: #{enhanced_esa3d_encoder.2} parent=11 // pred_fallthru
        _
      // Predicated region
      $region29: #{enhanced_esa3d_encoder.2} parent=11 // pred_check
        %p301 = pneg %p122
      $region30: #{enhanced_esa3d_encoder.2} parent=11 // pred_check_branch
        %303 = sbr.rel (%p301) target = $region32
      $region31: #{enhanced_esa3d_encoder.2} parent=11 // pred_region
        _
      $region32: #{enhanced_esa3d_encoder.2} parent=11 // pred_fallthru
        _
      // Predicated region
      $region33: #{enhanced_esa3d_encoder.2} parent=11 // pred_check
        %p304 = pneg %p143
      $region34: #{enhanced_esa3d_encoder.2} parent=11 // pred_check_branch
        %306 = sbr.rel (%p304) target = $region36
      $region35: #{enhanced_esa3d_encoder.2} parent=11 // pred_region
        _
      $region36: #{enhanced_esa3d_encoder.2} parent=11 // pred_fallthru
        _
      // Predicated region
      $region37: #{enhanced_esa3d_encoder.2} parent=11 // pred_check
        %p307 = pneg %p164
      $region38: #{enhanced_esa3d_encoder.2} parent=11 // pred_check_branch
        %309 = sbr.rel (%p307) target = $region40
      $region39: #{enhanced_esa3d_encoder.2} parent=11 // pred_region
        _
      $region40: #{enhanced_esa3d_encoder.2} parent=11 // pred_fallthru
        _
      // Predicated region
      $region41: #{enhanced_esa3d_encoder.2} parent=11 // pred_check
        %p310 = pneg %p185
      $region42: #{enhanced_esa3d_encoder.2} parent=11 // pred_check_branch
        %312 = sbr.rel (%p310) target = $region44
      $region43: #{enhanced_esa3d_encoder.2} parent=11 // pred_region
        _
      $region44: #{enhanced_esa3d_encoder.2} parent=11 // pred_fallthru
        _
      // Predicated region
      $region45: #{enhanced_esa3d_encoder.2} parent=11 // pred_check
        %p313 = pneg %p206
      $region46: #{enhanced_esa3d_encoder.2} parent=11 // pred_check_branch
        %315 = sbr.rel (%p313) target = $region48
      $region47: #{enhanced_esa3d_encoder.2} parent=11 // pred_region
        _
      $region48: #{enhanced_esa3d_encoder.2} parent=11 // pred_fallthru
        _
      // Predicated region
      $region49: #{enhanced_esa3d_encoder.2} parent=11 // pred_check
        %p316 = pneg %p227
      $region50: #{enhanced_esa3d_encoder.2} parent=11 // pred_check_branch
        %318 = sbr.rel (%p316) target = $region52
      $region51: #{enhanced_esa3d_encoder.2} parent=11 // pred_region
        _
      $region52: #{enhanced_esa3d_encoder.2} parent=11 // pred_fallthru
        _
      // Predicated region
      $region53: #{enhanced_esa3d_encoder.2} parent=11 // pred_check
        %p319 = pneg %p248
      $region54: #{enhanced_esa3d_encoder.2} parent=11 // pred_check_branch
        %321 = sbr.rel (%p319) target = $region56
      $region55: #{enhanced_esa3d_encoder.2} parent=11 // pred_region
        _
      $region56: #{enhanced_esa3d_encoder.2} parent=11 // pred_fallthru
        _
    $region12: #{enhanced_esa3d_encoder.2} parent=5 // pred_fallthru
      _
    %p322 = scmp.lt.s32.totalorder %s17, 2
    // Predicated region
    $region57: #{enhanced_esa3d_encoder.2} parent=5 // pred_check
      %p323 = pneg %p322
    $region58: #{enhanced_esa3d_encoder.2} parent=5 // pred_check_branch
      %325 = sbr.rel (%p323) target = $region60
    $region59: #{enhanced_esa3d_encoder.2} parent=5 // pred_region
      _
    $region60: #{enhanced_esa3d_encoder.2} parent=5 // pred_fallthru
      _
    %p326 = scmp.le.s32.totalorder 1, %s17
    %p327 = scmp.lt.s32.totalorder %s17, 3
    %p328 = pnand %p326, %p327
    %p329 = pneg %p328
    // Predicated region
    $region61: #{enhanced_esa3d_encoder.2} parent=5 // pred_check
      _
    $region62: #{enhanced_esa3d_encoder.2} parent=5 // pred_check_branch
      %331 = sbr.rel (%p328) target = $region64
    $region63: #{enhanced_esa3d_encoder.2} parent=5 // pred_region
      %s332 = ssub.s32 %s17, 1
      %p333 = pneg %p38
      %p334 = pneg %p35
      %p335 = pneg %p59
      %p336 = pneg %p56
      %p337 = pneg %p80
      %p338 = pneg %p77
      %p339 = pneg %p101
      %p340 = pneg %p98
      %p341 = pneg %p122
      %p342 = pneg %p119
      %p343 = pneg %p143
      %p344 = pneg %p140
      %p345 = pneg %p164
      %p346 = pneg %p161
      %p347 = pneg %p185
      %p348 = pneg %p182
      %p349 = pneg %p206
      %p350 = pneg %p203
      %p351 = pneg %p227
      %p352 = pneg %p224
      %p353 = pneg %p248
      %p354 = pneg %p245
      %p355 = pneg %p274
      %p356 = pneg %p271
      %p357 = scmp.lt.s32.totalorder %s22, 1
      %s358 = scalar_select %p357, %s22, 1
      %s359 = smul.addr %s358, 8
      %s360 = scalar_lea.vmem %s11, %s359
      %p361 = scmp.lt.s32.totalorder %s22, 1
      %s362 = scalar_select %p361, %s22, 1
      %s363 = smul.addr %s362, 8
      %s364 = scalar_lea.vmem %s11, %s363
      %s366 = smul.u32 %s22, 8
      %v367 = vld [vmem:[%s2] sm:$0xff]
      %v368 = vld [vmem:[%s2 + $0x8] sm:$0xff]
      %v369 = vld [vmem:[%s3] sm:$0xf]
      %v370 = vld [vmem:[%s3 + $0x4] sm:$0xf]
      %v371 = vld [vmem:[%s4] sm:$0xf]
      %v372 = vld [vmem:[%s4 + $0x4] sm:$0xf]
      %v375 = vunpack.c.l.b16 %v369
      %v376 = vunpack.c.l.b16 %v370
      %v377 = vpack.c.b16 %v376, %v375
      %v380 = vunpack.c.l.b16 %v371
      %v381 = vunpack.c.l.b16 %v372
      %v382 = vpack.c.b16 %v381, %v380
      %vm384 = vcmask 130048
      %v386 = vsel %vm384, %v377, 0
      %388 = vmatprep.subr.bf16.mxu0 0
      %389 = vmatpush1.bf16.msra.mxu0 %v382
      %390 = vmatprep.subr.bf16.mxu0 0
      %391 = vmatpush1.bf16.msra.mxu0 0
      %392 = vmatprep.subr.bf16.mxu0 0
      %393 = vmatpush1.bf16.msra.mxu0 0
      %394 = vmatprep.subr.bf16.mxu0 0
      %395 = vmatpush1.bf16.msra.mxu0 0
      %396 = vmatprep.subr.bf16.mxu0 0
      %397 = vmatpush1.bf16.msra.mxu0 0
      %398 = vmatprep.subr.bf16.mxu0 0
      %399 = vmatpush1.bf16.msra.mxu0 0
      %400 = vmatprep.subr.bf16.mxu0 0
      %401 = vmatpush1.bf16.msra.mxu0 0
      %402 = vmatprep.subr.bf16.mxu0 0
      %403 = vmatpush1.bf16.msra.mxu0 0
      %404 = vmatprep.subr.bf16.mxu0 0
      %405 = vmatpush1.bf16.msra.mxu0 0
      %406 = vmatprep.subr.bf16.mxu0 0
      %407 = vmatpush1.bf16.msra.mxu0 0
      %408 = vmatprep.subr.bf16.mxu0 0
      %409 = vmatpush1.bf16.msra.mxu0 0
      %410 = vmatprep.subr.bf16.mxu0 0
      %411 = vmatpush1.bf16.msra.mxu0 0
      %412 = vmatprep.subr.bf16.mxu0 0
      %413 = vmatpush1.bf16.msra.mxu0 0
      %414 = vmatprep.subr.bf16.mxu0 0
      %415 = vmatpush1.bf16.msra.mxu0 0
      %416 = vmatprep.subr.bf16.mxu0 0
      %417 = vmatpush1.bf16.msra.mxu0 0
      %418 = vmatprep.subr.bf16.mxu0 0
      %419 = vmatpush1.bf16.msra.mxu0 0
      %420 = vmatprep.mubr.bf16.mxu0 0
      %421 = vmatmul.mubr.bf16.gmra.mrb[0].mxu0 %v386
      %v422 = vpop.f32.mrb[0].mxu0
      %v423 = vadd.f32 0.0, %v422
      %v424 = vpop.f32.mrb[0].mxu0
      %v425 = vpop.f32.mrb[0].mxu0
      %v426 = vadd.f32 0.0, %v425
      %v427 = vpop.f32.mrb[0].mxu0
      %428 = vdwg.mxu0
      %v429 = vadd.f32 %v367, %v423
      %v430 = vadd.f32 %v368, %v426
      %v431 = vpack.c.bf16 %v430, %v429
      %v432 = vld [vmem:[%s6] sm:$0xf]
      %v433 = vld [vmem:[%s6 + $0x4] sm:$0xf]
      %v434 = vld [vmem:[%s6 + $0x8] sm:$0xf]
      %v435 = vld [vmem:[%s6 + $0xc] sm:$0xf]
      %v440 = vunpack.c.l.b16 %v432
      %v441 = vunpack.c.l.b16 %v433
      %v442 = vunpack.c.l.b16 %v434
      %v443 = vunpack.c.l.b16 %v435
      %v444 = vpack.c.b16 %v441, %v440
      %v445 = vpack.c.b16 %v443, %v442
      %vm448 = vcmask 261120
      %v450 = vsel %vm448, %v431, 0
      %452 = vmatprep.subr.bf16.mxu0 0
      %453 = vmatpush1.bf16.msra.mxu0 %v444
      %454 = vmatprep.subr.bf16.mxu0 0
      %455 = vmatpush1.bf16.msra.mxu0 %v445
      %456 = vmatprep.subr.bf16.mxu0 0
      %457 = vmatpush1.bf16.msra.mxu0 0
      %458 = vmatprep.subr.bf16.mxu0 0
      %459 = vmatpush1.bf16.msra.mxu0 0
      %460 = vmatprep.subr.bf16.mxu0 0
      %461 = vmatpush1.bf16.msra.mxu0 0
      %462 = vmatprep.subr.bf16.mxu0 0
      %463 = vmatpush1.bf16.msra.mxu0 0
      %464 = vmatprep.subr.bf16.mxu0 0
      %465 = vmatpush1.bf16.msra.mxu0 0
      %466 = vmatprep.subr.bf16.mxu0 0
      %467 = vmatpush1.bf16.msra.mxu0 0
      %468 = vmatprep.subr.bf16.mxu0 0
      %469 = vmatpush1.bf16.msra.mxu0 0
      %470 = vmatprep.subr.bf16.mxu0 0
      %471 = vmatpush1.bf16.msra.mxu0 0
      %472 = vmatprep.subr.bf16.mxu0 0
      %473 = vmatpush1.bf16.msra.mxu0 0
      %474 = vmatprep.subr.bf16.mxu0 0
      %475 = vmatpush1.bf16.msra.mxu0 0
      %476 = vmatprep.subr.bf16.mxu0 0
      %477 = vmatpush1.bf16.msra.mxu0 0
      %478 = vmatprep.subr.bf16.mxu0 0
      %479 = vmatpush1.bf16.msra.mxu0 0
      %480 = vmatprep.subr.bf16.mxu0 0
      %481 = vmatpush1.bf16.msra.mxu0 0
      %482 = vmatprep.subr.bf16.mxu0 0
      %483 = vmatpush1.bf16.msra.mxu0 0
      %484 = vmatprep.mubr.bf16.mxu0 0
      %485 = vmatmul.mubr.bf16.gmra.mrb[0].mxu0 %v450
      %v486 = vpop.f32.mrb[0].mxu0
      %v487 = vadd.f32 0.0, %v486
      %v488 = vpop.f32.mrb[0].mxu0
      %v489 = vpop.f32.mrb[0].mxu0
      %v490 = vadd.f32 0.0, %v489
      %v491 = vpop.f32.mrb[0].mxu0
      %492 = vdwg.mxu0
      %v493 = vld [vmem:[%s7] sm:$0xf]
      %v494 = vld [vmem:[%s7 + $0x4] sm:$0xf]
      %v495 = vld [vmem:[%s7 + $0x8] sm:$0xf]
      %v496 = vld [vmem:[%s7 + $0xc] sm:$0xf]
      %v501 = vunpack.c.l.b16 %v493
      %v502 = vunpack.c.l.b16 %v494
      %v503 = vunpack.c.l.b16 %v495
      %v504 = vunpack.c.l.b16 %v496
      %v505 = vpack.c.b16 %v502, %v501
      %v506 = vpack.c.b16 %v504, %v503
      %509 = vmatprep.subr.bf16.mxu0 0
      %510 = vmatpush1.bf16.msra.mxu0 %v505
      %511 = vmatprep.subr.bf16.mxu0 0
      %512 = vmatpush1.bf16.msra.mxu0 %v506
      %513 = vmatprep.subr.bf16.mxu0 0
      %514 = vmatpush1.bf16.msra.mxu0 0
      %515 = vmatprep.subr.bf16.mxu0 0
      %516 = vmatpush1.bf16.msra.mxu0 0
      %517 = vmatprep.subr.bf16.mxu0 0
      %518 = vmatpush1.bf16.msra.mxu0 0
      %519 = vmatprep.subr.bf16.mxu0 0
      %520 = vmatpush1.bf16.msra.mxu0 0
      %521 = vmatprep.subr.bf16.mxu0 0
      %522 = vmatpush1.bf16.msra.mxu0 0
      %523 = vmatprep.subr.bf16.mxu0 0
      %524 = vmatpush1.bf16.msra.mxu0 0
      %525 = vmatprep.subr.bf16.mxu0 0
      %526 = vmatpush1.bf16.msra.mxu0 0
      %527 = vmatprep.subr.bf16.mxu0 0
      %528 = vmatpush1.bf16.msra.mxu0 0
      %529 = vmatprep.subr.bf16.mxu0 0
      %530 = vmatpush1.bf16.msra.mxu0 0
      %531 = vmatprep.subr.bf16.mxu0 0
      %532 = vmatpush1.bf16.msra.mxu0 0
      %533 = vmatprep.subr.bf16.mxu0 0
      %534 = vmatpush1.bf16.msra.mxu0 0
      %535 = vmatprep.subr.bf16.mxu0 0
      %536 = vmatpush1.bf16.msra.mxu0 0
      %537 = vmatprep.subr.bf16.mxu0 0
      %538 = vmatpush1.bf16.msra.mxu0 0
      %539 = vmatprep.subr.bf16.mxu0 0
      %540 = vmatpush1.bf16.msra.mxu0 0
      %541 = vmatprep.mubr.bf16.mxu0 0
      %542 = vmatmul.mubr.bf16.gmra.mrb[0].mxu0 %v450
      %v543 = vpop.f32.mrb[0].mxu0
      %v544 = vadd.f32 0.0, %v543
      %v545 = vpop.f32.mrb[0].mxu0
      %v546 = vpop.f32.mrb[0].mxu0
      %v547 = vadd.f32 0.0, %v546
      %v548 = vpop.f32.mrb[0].mxu0
      %549 = vdwg.mxu0
      %v550 = vpack.c.bf16 %v490, %v487
      %v551 = vpack.c.bf16 %v547, %v544
      %v552 = vpack.c.bf16 %v368, %v367
      %s553 = scalar_lea.vmem %s2, %s366
      %v554 = vld [vmem:[%s553] sm:$0xff]
      %s555 = sshra.s32 %s366, 3
      %s556 = sand.u32 %s366, 7
      %s557 = smul.addr %s555, 4
      %s558 = scalar_lea.vmem %s3, %s557
      %v559 = vld [vmem:[%s558] sm:$0xf]
      %v561 = vsel %vm384, %v559, 0
      %563 = vmatprep.subr.bf16.mxu0 0
      %564 = vmatpush1.bf16.msra.mxu0 %v382
      %565 = vmatprep.subr.bf16.mxu0 0
      %566 = vmatpush1.bf16.msra.mxu0 0
      %567 = vmatprep.subr.bf16.mxu0 0
      %568 = vmatpush1.bf16.msra.mxu0 0
      %569 = vmatprep.subr.bf16.mxu0 0
      %570 = vmatpush1.bf16.msra.mxu0 0
      %571 = vmatprep.subr.bf16.mxu0 0
      %572 = vmatpush1.bf16.msra.mxu0 0
      %573 = vmatprep.subr.bf16.mxu0 0
      %574 = vmatpush1.bf16.msra.mxu0 0
      %575 = vmatprep.subr.bf16.mxu0 0
      %576 = vmatpush1.bf16.msra.mxu0 0
      %577 = vmatprep.subr.bf16.mxu0 0
      %578 = vmatpush1.bf16.msra.mxu0 0
      %579 = vmatprep.subr.bf16.mxu0 0
      %580 = vmatpush1.bf16.msra.mxu0 0
      %581 = vmatprep.subr.bf16.mxu0 0
      %582 = vmatpush1.bf16.msra.mxu0 0
      %583 = vmatprep.subr.bf16.mxu0 0
      %584 = vmatpush1.bf16.msra.mxu0 0
      %585 = vmatprep.subr.bf16.mxu0 0
      %586 = vmatpush1.bf16.msra.mxu0 0
      %587 = vmatprep.subr.bf16.mxu0 0
      %588 = vmatpush1.bf16.msra.mxu0 0
      %589 = vmatprep.subr.bf16.mxu0 0
      %590 = vmatpush1.bf16.msra.mxu0 0
      %591 = vmatprep.subr.bf16.mxu0 0
      %592 = vmatpush1.bf16.msra.mxu0 0
      %593 = vmatprep.subr.bf16.mxu0 0
      %594 = vmatpush1.bf16.msra.mxu0 0
      %595 = vmatprep.mubr.bf16.mxu0 0
      %596 = vmatmul.mubr.bf16.gmra.mrb[0].mxu0 %v561
      %v597 = vpop.f32.mrb[0].mxu0
      %v598 = vadd.f32 0.0, %v597
      %v599 = vpop.f32.mrb[0].mxu0
      %v600 = vpop.f32.mrb[0].mxu0
      %v601 = vpop.f32.mrb[0].mxu0
      %602 = vdwg.mxu0
      %v603 = vadd.f32 %v554, %v598
      %v604 = vpack.c.bf16 %v603, %v603
      %v605 = vld [vmem:[%s5] sm:$0xf]
      %v606 = vld [vmem:[%s5 + $0x4] sm:$0xf]
      %v607 = vld [vmem:[%s5 + $0x8] sm:$0xf]
      %v608 = vld [vmem:[%s5 + $0xc] sm:$0xf]
      %v613 = vunpack.c.l.b16 %v605
      %v614 = vunpack.c.l.b16 %v606
      %v615 = vunpack.c.l.b16 %v607
      %v616 = vunpack.c.l.b16 %v608
      %v617 = vpack.c.b16 %v614, %v613
      %v618 = vpack.c.b16 %v616, %v615
      %v622 = vsel %vm448, %v604, 0
      %624 = vmatprep.subr.bf16.mxu0 0
      %625 = vmatpush1.bf16.msra.mxu0 %v617
      %626 = vmatprep.subr.bf16.mxu0 0
      %627 = vmatpush1.bf16.msra.mxu0 %v618
      %628 = vmatprep.subr.bf16.mxu0 0
      %629 = vmatpush1.bf16.msra.mxu0 0
      %630 = vmatprep.subr.bf16.mxu0 0
      %631 = vmatpush1.bf16.msra.mxu0 0
      %632 = vmatprep.subr.bf16.mxu0 0
      %633 = vmatpush1.bf16.msra.mxu0 0
      %634 = vmatprep.subr.bf16.mxu0 0
      %635 = vmatpush1.bf16.msra.mxu0 0
      %636 = vmatprep.subr.bf16.mxu0 0
      %637 = vmatpush1.bf16.msra.mxu0 0
      %638 = vmatprep.subr.bf16.mxu0 0
      %639 = vmatpush1.bf16.msra.mxu0 0
      %640 = vmatprep.subr.bf16.mxu0 0
      %641 = vmatpush1.bf16.msra.mxu0 0
      %642 = vmatprep.subr.bf16.mxu0 0
      %643 = vmatpush1.bf16.msra.mxu0 0
      %644 = vmatprep.subr.bf16.mxu0 0
      %645 = vmatpush1.bf16.msra.mxu0 0
      %646 = vmatprep.subr.bf16.mxu0 0
      %647 = vmatpush1.bf16.msra.mxu0 0
      %648 = vmatprep.subr.bf16.mxu0 0
      %649 = vmatpush1.bf16.msra.mxu0 0
      %650 = vmatprep.subr.bf16.mxu0 0
      %651 = vmatpush1.bf16.msra.mxu0 0
      %652 = vmatprep.subr.bf16.mxu0 0
      %653 = vmatpush1.bf16.msra.mxu0 0
      %654 = vmatprep.subr.bf16.mxu0 0
      %655 = vmatpush1.bf16.msra.mxu0 0
      %656 = vmatprep.mubr.bf16.mxu0 0
      %657 = vmatmul.mubr.bf16.gmra.mrb[0].mxu0 %v622
      %v658 = vpop.f32.mrb[0].mxu0
      %v659 = vadd.f32 0.0, %v658
      %v660 = vpop.f32.mrb[0].mxu0
      %v661 = vpop.f32.mrb[0].mxu0
      %v662 = vpop.f32.mrb[0].mxu0
      %663 = vdwg.mxu0
      %s664 = scalar_lea.vmem %s0, %s366
      %v665 = vld [vmem:[%s664] sm:$0xff]
      %v666 = vld [vmem:[%s1] sm:$0x1]
      %667 = vset.pattern.permute.xlu0 0
      %668 = vperm.xlu0 %667, %v665
      %v669 = vpop.permute.xlu0 %668
      %v670 = vlaneseq
      %v671 = vshrl.u32 %v670, 7
      %v672 = vsub.s32 0, %v671
      %v673 = vrot.slane %v666, %v672
      %vm674 = vcmp.eq.s32.totalorder %v669, %v673
      %v675 = vsel %vm674, 1, 0
      %v676 = vcvt.s32.f32 %v675
      %v677 = vpack.c.bf16 %v659, %v659
      %vm678 = vcmask 64512
      %v680 = vsel %vm678, %v677, 0
      %v683 = vsel %vm678, %v550, 0
      %685 = vmatprep.subr.bf16.mxu0 0
      %686 = vmatpush1.bf16.xpose.msra.mxu0 %v683
      %687 = vmatprep.subr.bf16.mxu0 0
      %688 = vmatpush1.bf16.xpose.msra.mxu0 0
      %689 = vmatprep.subr.bf16.mxu0 0
      %690 = vmatpush1.bf16.xpose.msra.mxu0 0
      %691 = vmatprep.subr.bf16.mxu0 0
      %692 = vmatpush1.bf16.xpose.msra.mxu0 0
      %693 = vmatprep.subr.bf16.mxu0 0
      %694 = vmatpush1.bf16.xpose.msra.mxu0 0
      %695 = vmatprep.subr.bf16.mxu0 0
      %696 = vmatpush1.bf16.xpose.msra.mxu0 0
      %697 = vmatprep.subr.bf16.mxu0 0
      %698 = vmatpush1.bf16.xpose.msra.mxu0 0
      %699 = vmatprep.subr.bf16.mxu0 0
      %700 = vmatpush1.bf16.xpose.msra.mxu0 0
      %701 = vmatprep.subr.bf16.mxu0 0
      %702 = vmatpush1.bf16.xpose.msra.mxu0 0
      %703 = vmatprep.subr.bf16.mxu0 0
      %704 = vmatpush1.bf16.xpose.msra.mxu0 0
      %705 = vmatprep.subr.bf16.mxu0 0
      %706 = vmatpush1.bf16.xpose.msra.mxu0 0
      %707 = vmatprep.subr.bf16.mxu0 0
      %708 = vmatpush1.bf16.xpose.msra.mxu0 0
      %709 = vmatprep.subr.bf16.mxu0 0
      %710 = vmatpush1.bf16.xpose.msra.mxu0 0
      %711 = vmatprep.subr.bf16.mxu0 0
      %712 = vmatpush1.bf16.xpose.msra.mxu0 0
      %713 = vmatprep.subr.bf16.mxu0 0
      %714 = vmatpush1.bf16.xpose.msra.mxu0 0
      %715 = vmatprep.subr.bf16.mxu0 0
      %716 = vmatpush1.bf16.xpose.msra.mxu0 0
      %717 = vmatprep.mubr.bf16.mxu0 0
      %718 = vmatmul.mubr.bf16.gmra.mrb[0].mxu0 %v680
      %v719 = vpop.f32.mrb[0].mxu0
      %v720 = vadd.f32 0.0, %v719
      %v721 = vpop.f32.mrb[0].mxu0
      %v722 = vpop.f32.mrb[0].mxu0
      %v723 = vpop.f32.mrb[0].mxu0
      %724 = vdwg.mxu0
      %v725 = vsel %vm384, %v720, -inf
      %726 = vmax.xlane.f32.xlu0 %v725
      %v727 = vpop.xlane.xlu0 %726
      %v728 = vsub.f32 %v720, %v727
      %v729 = vmul.f32 %v728, 1.442695
      %v730 = vpow.pop %v729
      %v731 = vmul.f32 %v730, %v676
      %v732 = vsub.f32 %v730, %v731
      %v733 = vsel %vm384, %v731, 0.0
      %734 = vadd.xlane.f32.xlu0 %v733
      %v735 = vpop.xlane.xlu0 %734
      %v736 = vadd.f32 %v735, 1e-09
      %v737 = vrcp.pop %v736
      %v738 = vsel %vm384, %v732, 0.0
      %739 = vadd.xlane.f32.xlu0 %v738
      %v740 = vpop.xlane.xlu0 %739
      %v741 = vadd.f32 %v740, 1e-09
      %v742 = vrcp.pop %v741
      %v743 = vmul.f32 %v731, %v737
      %v744 = vmul.f32 %v732, %v742
      %v745 = vadd.f32 %v743, %v744
      %v746 = vadd.f32 %v745, 0.0
      %v747 = vpack.c.bf16 %v745, %v745
      %749 = vrot.lane.b32.xlu0 %v677, 120
      %v750 = vpop.permute.xlu0 %749
      %752 = vrot.lane.b32.xlu0 %v550, 120
      %v753 = vpop.permute.xlu0 %752
      %v755 = vsel %vm678, %v750, 0
      %v758 = vsel %vm678, %v753, 0
      %760 = vmatprep.subr.bf16.mxu0 0
      %761 = vmatpush1.bf16.xpose.msra.mxu0 %v758
      %762 = vmatprep.subr.bf16.mxu0 0
      %763 = vmatpush1.bf16.xpose.msra.mxu0 0
      %764 = vmatprep.subr.bf16.mxu0 0
      %765 = vmatpush1.bf16.xpose.msra.mxu0 0
      %766 = vmatprep.subr.bf16.mxu0 0
      %767 = vmatpush1.bf16.xpose.msra.mxu0 0
      %768 = vmatprep.subr.bf16.mxu0 0
      %769 = vmatpush1.bf16.xpose.msra.mxu0 0
      %770 = vmatprep.subr.bf16.mxu0 0
      %771 = vmatpush1.bf16.xpose.msra.mxu0 0
      %772 = vmatprep.subr.bf16.mxu0 0
      %773 = vmatpush1.bf16.xpose.msra.mxu0 0
      %774 = vmatprep.subr.bf16.mxu0 0
      %775 = vmatpush1.bf16.xpose.msra.mxu0 0
      %776 = vmatprep.subr.bf16.mxu0 0
      %777 = vmatpush1.bf16.xpose.msra.mxu0 0
      %778 = vmatprep.subr.bf16.mxu0 0
      %779 = vmatpush1.bf16.xpose.msra.mxu0 0
      %780 = vmatprep.subr.bf16.mxu0 0
      %781 = vmatpush1.bf16.xpose.msra.mxu0 0
      %782 = vmatprep.subr.bf16.mxu0 0
      %783 = vmatpush1.bf16.xpose.msra.mxu0 0
      %784 = vmatprep.subr.bf16.mxu0 0
      %785 = vmatpush1.bf16.xpose.msra.mxu0 0
      %786 = vmatprep.subr.bf16.mxu0 0
      %787 = vmatpush1.bf16.xpose.msra.mxu0 0
      %788 = vmatprep.subr.bf16.mxu0 0
      %789 = vmatpush1.bf16.xpose.msra.mxu0 0
      %790 = vmatprep.subr.bf16.mxu0 0
      %791 = vmatpush1.bf16.xpose.msra.mxu0 0
      %792 = vmatprep.mubr.bf16.mxu0 0
      %793 = vmatmul.mubr.bf16.gmra.mrb[0].mxu0 %v755
      %v794 = vpop.f32.mrb[0].mxu0
      %v795 = vadd.f32 0.0, %v794
      %v796 = vpop.f32.mrb[0].mxu0
      %v797 = vpop.f32.mrb[0].mxu0
      %v798 = vpop.f32.mrb[0].mxu0
      %799 = vdwg.mxu0
      %v800 = vsel %vm384, %v795, -inf
      %801 = vmax.xlane.f32.xlu0 %v800
      %v802 = vpop.xlane.xlu0 %801
      %v803 = vsub.f32 %v795, %v802
      %v804 = vmul.f32 %v803, 1.442695
      %v805 = vpow.pop %v804
      %v806 = vmul.f32 %v805, %v676
      %v807 = vsub.f32 %v805, %v806
      %v808 = vsel %vm384, %v806, 0.0
      %809 = vadd.xlane.f32.xlu0 %v808
      %v810 = vpop.xlane.xlu0 %809
      %v811 = vadd.f32 %v810, 1e-09
      %v812 = vrcp.pop %v811
      %v813 = vsel %vm384, %v807, 0.0
      %814 = vadd.xlane.f32.xlu0 %v813
      %v815 = vpop.xlane.xlu0 %814
      %v816 = vadd.f32 %v815, 1e-09
      %v817 = vrcp.pop %v816
      %v818 = vmul.f32 %v806, %v812
      %v819 = vmul.f32 %v807, %v817
      %v820 = vadd.f32 %v818, %v819
      %v821 = vadd.f32 %v746, %v820
      %v822 = vpack.c.bf16 %v820, %v820
      %824 = vrot.lane.b32.xlu0 %v551, 96
      %v825 = vpop.permute.xlu0 %824
      %v828 = vsel %vm384, %v822, 0
      %830 = vmatprep.subr.bf16.mxu0 0
      %831 = vmatpush1.bf16.msra.mxu0 %v825
      %832 = vmatprep.subr.bf16.mxu0 0
      %833 = vmatpush1.bf16.msra.mxu0 0
      %834 = vmatprep.subr.bf16.mxu0 0
      %835 = vmatpush1.bf16.msra.mxu0 0
      %836 = vmatprep.subr.bf16.mxu0 0
      %837 = vmatpush1.bf16.msra.mxu0 0
      %838 = vmatprep.subr.bf16.mxu0 0
      %839 = vmatpush1.bf16.msra.mxu0 0
      %840 = vmatprep.subr.bf16.mxu0 0
      %841 = vmatpush1.bf16.msra.mxu0 0
      %842 = vmatprep.subr.bf16.mxu0 0
      %843 = vmatpush1.bf16.msra.mxu0 0
      %844 = vmatprep.subr.bf16.mxu0 0
      %845 = vmatpush1.bf16.msra.mxu0 0
      %846 = vmatprep.subr.bf16.mxu0 0
      %847 = vmatpush1.bf16.msra.mxu0 0
      %848 = vmatprep.subr.bf16.mxu0 0
      %849 = vmatpush1.bf16.msra.mxu0 0
      %850 = vmatprep.subr.bf16.mxu0 0
      %851 = vmatpush1.bf16.msra.mxu0 0
      %852 = vmatprep.subr.bf16.mxu0 0
      %853 = vmatpush1.bf16.msra.mxu0 0
      %854 = vmatprep.subr.bf16.mxu0 0
      %855 = vmatpush1.bf16.msra.mxu0 0
      %856 = vmatprep.subr.bf16.mxu0 0
      %857 = vmatpush1.bf16.msra.mxu0 0
      %858 = vmatprep.subr.bf16.mxu0 0
      %859 = vmatpush1.bf16.msra.mxu0 0
      %860 = vmatprep.subr.bf16.mxu0 0
      %861 = vmatpush1.bf16.msra.mxu0 0
      %862 = vmatprep.mubr.bf16.mxu0 0
      %863 = vmatmul.mubr.bf16.gmra.mrb[0].mxu0 %v828
      %v864 = vpop.f32.mrb[0].mxu0
      %v865 = vadd.f32 0.0, %v864
      %v866 = vpop.f32.mrb[0].mxu0
      %v867 = vpop.f32.mrb[0].mxu0
      %v868 = vpop.f32.mrb[0].mxu0
      %869 = vdwg.mxu0
      %v871 = vsel %vm384, %v747, 0
      %873 = vmatprep.subr.bf16.mxu0 0
      %874 = vmatpush1.bf16.msra.mxu0 %v551
      %875 = vmatprep.subr.bf16.mxu0 0
      %876 = vmatpush1.bf16.msra.mxu0 0
      %877 = vmatprep.subr.bf16.mxu0 0
      %878 = vmatpush1.bf16.msra.mxu0 0
      %879 = vmatprep.subr.bf16.mxu0 0
      %880 = vmatpush1.bf16.msra.mxu0 0
      %881 = vmatprep.subr.bf16.mxu0 0
      %882 = vmatpush1.bf16.msra.mxu0 0
      %883 = vmatprep.subr.bf16.mxu0 0
      %884 = vmatpush1.bf16.msra.mxu0 0
      %885 = vmatprep.subr.bf16.mxu0 0
      %886 = vmatpush1.bf16.msra.mxu0 0
      %887 = vmatprep.subr.bf16.mxu0 0
      %888 = vmatpush1.bf16.msra.mxu0 0
      %889 = vmatprep.subr.bf16.mxu0 0
      %890 = vmatpush1.bf16.msra.mxu0 0
      %891 = vmatprep.subr.bf16.mxu0 0
      %892 = vmatpush1.bf16.msra.mxu0 0
      %893 = vmatprep.subr.bf16.mxu0 0
      %894 = vmatpush1.bf16.msra.mxu0 0
      %895 = vmatprep.subr.bf16.mxu0 0
      %896 = vmatpush1.bf16.msra.mxu0 0
      %897 = vmatprep.subr.bf16.mxu0 0
      %898 = vmatpush1.bf16.msra.mxu0 0
      %899 = vmatprep.subr.bf16.mxu0 0
      %900 = vmatpush1.bf16.msra.mxu0 0
      %901 = vmatprep.subr.bf16.mxu0 0
      %902 = vmatpush1.bf16.msra.mxu0 0
      %903 = vmatprep.subr.bf16.mxu0 0
      %904 = vmatpush1.bf16.msra.mxu0 0
      %905 = vmatprep.mubr.bf16.mxu0 0
      %906 = vmatmul.mubr.bf16.gmra.mrb[0].mxu0 %v871
      %v907 = vpop.f32.mrb[0].mxu0
      %v908 = vadd.f32 %v865, %v907
      %v909 = vpop.f32.mrb[0].mxu0
      %v910 = vpop.f32.mrb[0].mxu0
      %v911 = vpop.f32.mrb[0].mxu0
      %912 = vdwg.mxu0
      %913 = vrot.lane.b32.xlu0 %v677, 112
      %v914 = vpop.permute.xlu0 %913
      %915 = vrot.lane.b32.xlu0 %v550, 112
      %v916 = vpop.permute.xlu0 %915
      %v918 = vsel %vm678, %v914, 0
      %v921 = vsel %vm678, %v916, 0
      %923 = vmatprep.subr.bf16.mxu0 0
      %924 = vmatpush1.bf16.xpose.msra.mxu0 %v921
      %925 = vmatprep.subr.bf16.mxu0 0
      %926 = vmatpush1.bf16.xpose.msra.mxu0 0
      %927 = vmatprep.subr.bf16.mxu0 0
      %928 = vmatpush1.bf16.xpose.msra.mxu0 0
      %929 = vmatprep.subr.bf16.mxu0 0
      %930 = vmatpush1.bf16.xpose.msra.mxu0 0
      %931 = vmatprep.subr.bf16.mxu0 0
      %932 = vmatpush1.bf16.xpose.msra.mxu0 0
      %933 = vmatprep.subr.bf16.mxu0 0
      %934 = vmatpush1.bf16.xpose.msra.mxu0 0
      %935 = vmatprep.subr.bf16.mxu0 0
      %936 = vmatpush1.bf16.xpose.msra.mxu0 0
      %937 = vmatprep.subr.bf16.mxu0 0
      %938 = vmatpush1.bf16.xpose.msra.mxu0 0
      %939 = vmatprep.subr.bf16.mxu0 0
      %940 = vmatpush1.bf16.xpose.msra.mxu0 0
      %941 = vmatprep.subr.bf16.mxu0 0
      %942 = vmatpush1.bf16.xpose.msra.mxu0 0
      %943 = vmatprep.subr.bf16.mxu0 0
      %944 = vmatpush1.bf16.xpose.msra.mxu0 0
      %945 = vmatprep.subr.bf16.mxu0 0
      %946 = vmatpush1.bf16.xpose.msra.mxu0 0
      %947 = vmatprep.subr.bf16.mxu0 0
      %948 = vmatpush1.bf16.xpose.msra.mxu0 0
      %949 = vmatprep.subr.bf16.mxu0 0
      %950 = vmatpush1.bf16.xpose.msra.mxu0 0
      %951 = vmatprep.subr.bf16.mxu0 0
      %952 = vmatpush1.bf16.xpose.msra.mxu0 0
      %953 = vmatprep.subr.bf16.mxu0 0
      %954 = vmatpush1.bf16.xpose.msra.mxu0 0
      %955 = vmatprep.mubr.bf16.mxu0 0
      %956 = vmatmul.mubr.bf16.gmra.mrb[0].mxu0 %v918
      %v957 = vpop.f32.mrb[0].mxu0
      %v958 = vadd.f32 0.0, %v957
      %v959 = vpop.f32.mrb[0].mxu0
      %v960 = vpop.f32.mrb[0].mxu0
      %v961 = vpop.f32.mrb[0].mxu0
      %962 = vdwg.mxu0
      %v963 = vsel %vm384, %v958, -inf
      %964 = vmax.xlane.f32.xlu0 %v963
      %v965 = vpop.xlane.xlu0 %964
      %v966 = vsub.f32 %v958, %v965
      %v967 = vmul.f32 %v966, 1.442695
      %v968 = vpow.pop %v967
      %v969 = vmul.f32 %v968, %v676
      %v970 = vsub.f32 %v968, %v969
      %v971 = vsel %vm384, %v969, 0.0
      %972 = vadd.xlane.f32.xlu0 %v971
      %v973 = vpop.xlane.xlu0 %972
      %v974 = vadd.f32 %v973, 1e-09
      %v975 = vrcp.pop %v974
      %v976 = vsel %vm384, %v970, 0.0
      %977 = vadd.xlane.f32.xlu0 %v976
      %v978 = vpop.xlane.xlu0 %977
      %v979 = vadd.f32 %v978, 1e-09
      %v980 = vrcp.pop %v979
      %v981 = vmul.f32 %v969, %v975
      %v982 = vmul.f32 %v970, %v980
      %v983 = vadd.f32 %v981, %v982
      %v984 = vadd.f32 %v821, %v983
      %v985 = vpack.c.bf16 %v983, %v983
      %986 = vrot.lane.b32.xlu0 %v551, 64
      %v987 = vpop.permute.xlu0 %986
      %v990 = vsel %vm384, %v985, 0
      %992 = vmatprep.subr.bf16.mxu0 0
      %993 = vmatpush1.bf16.msra.mxu0 %v987
      %994 = vmatprep.subr.bf16.mxu0 0
      %995 = vmatpush1.bf16.msra.mxu0 0
      %996 = vmatprep.subr.bf16.mxu0 0
      %997 = vmatpush1.bf16.msra.mxu0 0
      %998 = vmatprep.subr.bf16.mxu0 0
      %999 = vmatpush1.bf16.msra.mxu0 0
      %1000 = vmatprep.subr.bf16.mxu0 0
      %1001 = vmatpush1.bf16.msra.mxu0 0
      %1002 = vmatprep.subr.bf16.mxu0 0
      %1003 = vmatpush1.bf16.msra.mxu0 0
      %1004 = vmatprep.subr.bf16.mxu0 0
      %1005 = vmatpush1.bf16.msra.mxu0 0
      %1006 = vmatprep.subr.bf16.mxu0 0
      %1007 = vmatpush1.bf16.msra.mxu0 0
      %1008 = vmatprep.subr.bf16.mxu0 0
      %1009 = vmatpush1.bf16.msra.mxu0 0
      %1010 = vmatprep.subr.bf16.mxu0 0
      %1011 = vmatpush1.bf16.msra.mxu0 0
      %1012 = vmatprep.subr.bf16.mxu0 0
      %1013 = vmatpush1.bf16.msra.mxu0 0
      %1014 = vmatprep.subr.bf16.mxu0 0
      %1015 = vmatpush1.bf16.msra.mxu0 0
      %1016 = vmatprep.subr.bf16.mxu0 0
      %1017 = vmatpush1.bf16.msra.mxu0 0
      %1018 = vmatprep.subr.bf16.mxu0 0
      %1019 = vmatpush1.bf16.msra.mxu0 0
      %1020 = vmatprep.subr.bf16.mxu0 0
      %1021 = vmatpush1.bf16.msra.mxu0 0
      %1022 = vmatprep.subr.bf16.mxu0 0
      %1023 = vmatpush1.bf16.msra.mxu0 0
      %1024 = vmatprep.mubr.bf16.mxu0 0
      %1025 = vmatmul.mubr.bf16.gmra.mrb[0].mxu0 %v990
      %v1026 = vpop.f32.mrb[0].mxu0
      %v1027 = vadd.f32 0.0, %v1026
      %v1028 = vpop.f32.mrb[0].mxu0
      %v1029 = vpop.f32.mrb[0].mxu0
      %v1030 = vpop.f32.mrb[0].mxu0
      %1031 = vdwg.mxu0
      %v1032 = vadd.f32 %v908, %v1027
      %1033 = vrot.lane.b32.xlu0 %v677, 104
      %v1034 = vpop.permute.xlu0 %1033
      %1035 = vrot.lane.b32.xlu0 %v550, 104
      %v1036 = vpop.permute.xlu0 %1035
      %v1038 = vsel %vm678, %v1034, 0
      %v1041 = vsel %vm678, %v1036, 0
      %1043 = vmatprep.subr.bf16.mxu0 0
      %1044 = vmatpush1.bf16.xpose.msra.mxu0 %v1041
      %1045 = vmatprep.subr.bf16.mxu0 0
      %1046 = vmatpush1.bf16.xpose.msra.mxu0 0
      %1047 = vmatprep.subr.bf16.mxu0 0
      %1048 = vmatpush1.bf16.xpose.msra.mxu0 0
      %1049 = vmatprep.subr.bf16.mxu0 0
      %1050 = vmatpush1.bf16.xpose.msra.mxu0 0
      %1051 = vmatprep.subr.bf16.mxu0 0
      %1052 = vmatpush1.bf16.xpose.msra.mxu0 0
      %1053 = vmatprep.subr.bf16.mxu0 0
      %1054 = vmatpush1.bf16.xpose.msra.mxu0 0
      %1055 = vmatprep.subr.bf16.mxu0 0
      %1056 = vmatpush1.bf16.xpose.msra.mxu0 0
      %1057 = vmatprep.subr.bf16.mxu0 0
      %1058 = vmatpush1.bf16.xpose.msra.mxu0 0
      %1059 = vmatprep.subr.bf16.mxu0 0
      %1060 = vmatpush1.bf16.xpose.msra.mxu0 0
      %1061 = vmatprep.subr.bf16.mxu0 0
      %1062 = vmatpush1.bf16.xpose.msra.mxu0 0
      %1063 = vmatprep.subr.bf16.mxu0 0
      %1064 = vmatpush1.bf16.xpose.msra.mxu0 0
      %1065 = vmatprep.subr.bf16.mxu0 0
      %1066 = vmatpush1.bf16.xpose.msra.mxu0 0
      %1067 = vmatprep.subr.bf16.mxu0 0
      %1068 = vmatpush1.bf16.xpose.msra.mxu0 0
      %1069 = vmatprep.subr.bf16.mxu0 0
      %1070 = vmatpush1.bf16.xpose.msra.mxu0 0
      %1071 = vmatprep.subr.bf16.mxu0 0
      %1072 = vmatpush1.bf16.xpose.msra.mxu0 0
      %1073 = vmatprep.subr.bf16.mxu0 0
      %1074 = vmatpush1.bf16.xpose.msra.mxu0 0
      %1075 = vmatprep.mubr.bf16.mxu0 0
      %1076 = vmatmul.mubr.bf16.gmra.mrb[0].mxu0 %v1038
      %v1077 = vpop.f32.mrb[0].mxu0
      %v1078 = vadd.f32 0.0, %v1077
      %v1079 = vpop.f32.mrb[0].mxu0
      %v1080 = vpop.f32.mrb[0].mxu0
      %v1081 = vpop.f32.mrb[0].mxu0
      %1082 = vdwg.mxu0
      %v1083 = vsel %vm384, %v1078, -inf
      %1084 = vmax.xlane.f32.xlu0 %v1083
      %v1085 = vpop.xlane.xlu0 %1084
      %v1086 = vsub.f32 %v1078, %v1085
      %v1087 = vmul.f32 %v1086, 1.442695
      %v1088 = vpow.pop %v1087
      %v1089 = vmul.f32 %v1088, %v676
      %v1090 = vsub.f32 %v1088, %v1089
      %v1091 = vsel %vm384, %v1089, 0.0
      %1092 = vadd.xlane.f32.xlu0 %v1091
      %v1093 = vpop.xlane.xlu0 %1092
      %v1094 = vadd.f32 %v1093, 1e-09
      %v1095 = vrcp.pop %v1094
      %v1096 = vsel %vm384, %v1090, 0.0
      %1097 = vadd.xlane.f32.xlu0 %v1096
      %v1098 = vpop.xlane.xlu0 %1097
      %v1099 = vadd.f32 %v1098, 1e-09
      %v1100 = vrcp.pop %v1099
      %v1101 = vmul.f32 %v1089, %v1095
      %v1102 = vmul.f32 %v1090, %v1100
      %v1103 = vadd.f32 %v1101, %v1102
      %v1104 = vadd.f32 %v984, %v1103
      %v1105 = vpack.c.bf16 %v1103, %v1103
      %1106 = vrot.lane.b32.xlu0 %v551, 32
      %v1107 = vpop.permute.xlu0 %1106
      %v1110 = vsel %vm384, %v1105, 0
      %1112 = vmatprep.subr.bf16.mxu0 0
      %1113 = vmatpush1.bf16.msra.mxu0 %v1107
      %1114 = vmatprep.subr.bf16.mxu0 0
      %1115 = vmatpush1.bf16.msra.mxu0 0
      %1116 = vmatprep.subr.bf16.mxu0 0
      %1117 = vmatpush1.bf16.msra.mxu0 0
      %1118 = vmatprep.subr.bf16.mxu0 0
      %1119 = vmatpush1.bf16.msra.mxu0 0
      %1120 = vmatprep.subr.bf16.mxu0 0
      %1121 = vmatpush1.bf16.msra.mxu0 0
      %1122 = vmatprep.subr.bf16.mxu0 0
      %1123 = vmatpush1.bf16.msra.mxu0 0
      %1124 = vmatprep.subr.bf16.mxu0 0
      %1125 = vmatpush1.bf16.msra.mxu0 0
      %1126 = vmatprep.subr.bf16.mxu0 0
      %1127 = vmatpush1.bf16.msra.mxu0 0
      %1128 = vmatprep.subr.bf16.mxu0 0
      %1129 = vmatpush1.bf16.msra.mxu0 0
      %1130 = vmatprep.subr.bf16.mxu0 0
      %1131 = vmatpush1.bf16.msra.mxu0 0
      %1132 = vmatprep.subr.bf16.mxu0 0
      %1133 = vmatpush1.bf16.msra.mxu0 0
      %1134 = vmatprep.subr.bf16.mxu0 0
      %1135 = vmatpush1.bf16.msra.mxu0 0
      %1136 = vmatprep.subr.bf16.mxu0 0
      %1137 = vmatpush1.bf16.msra.mxu0 0
      %1138 = vmatprep.subr.bf16.mxu0 0
      %1139 = vmatpush1.bf16.msra.mxu0 0
      %1140 = vmatprep.subr.bf16.mxu0 0
      %1141 = vmatpush1.bf16.msra.mxu0 0
      %1142 = vmatprep.subr.bf16.mxu0 0
      %1143 = vmatpush1.bf16.msra.mxu0 0
      %1144 = vmatprep.mubr.bf16.mxu0 0
      %1145 = vmatmul.mubr.bf16.gmra.mrb[0].mxu0 %v1110
      %v1146 = vpop.f32.mrb[0].mxu0
      %v1147 = vadd.f32 0.0, %v1146
      %v1148 = vpop.f32.mrb[0].mxu0
      %v1149 = vpop.f32.mrb[0].mxu0
      %v1150 = vpop.f32.mrb[0].mxu0
      %1151 = vdwg.mxu0
      %v1152 = vadd.f32 %v1032, %v1147
      %v1153 = vadd.f32 %v554, %v1152
      %v1154 = vpack.c.bf16 %v1153, %v1153
      %v1155 = vld [vmem:[%s8] sm:$0xf]
      %v1156 = vld [vmem:[%s8 + $0x4] sm:$0xf]
      %v1157 = vld [vmem:[%s8 + $0x8] sm:$0xf]
      %v1158 = vld [vmem:[%s8 + $0xc] sm:$0xf]
      %v1163 = vunpack.c.l.b16 %v1155
      %v1164 = vunpack.c.l.b16 %v1156
      %v1165 = vunpack.c.l.b16 %v1157
      %v1166 = vunpack.c.l.b16 %v1158
      %v1167 = vpack.c.b16 %v1164, %v1163
      %v1168 = vpack.c.b16 %v1166, %v1165
      %v1172 = vsel %vm448, %v1154, 0
      %1174 = vmatprep.subr.bf16.mxu0 0
      %1175 = vmatpush1.bf16.msra.mxu0 %v1167
      %1176 = vmatprep.subr.bf16.mxu0 0
      %1177 = vmatpush1.bf16.msra.mxu0 %v1168
      %1178 = vmatprep.subr.bf16.mxu0 0
      %1179 = vmatpush1.bf16.msra.mxu0 0
      %1180 = vmatprep.subr.bf16.mxu0 0
      %1181 = vmatpush1.bf16.msra.mxu0 0
      %1182 = vmatprep.subr.bf16.mxu0 0
      %1183 = vmatpush1.bf16.msra.mxu0 0
      %1184 = vmatprep.subr.bf16.mxu0 0
      %1185 = vmatpush1.bf16.msra.mxu0 0
      %1186 = vmatprep.subr.bf16.mxu0 0
      %1187 = vmatpush1.bf16.msra.mxu0 0
      %1188 = vmatprep.subr.bf16.mxu0 0
      %1189 = vmatpush1.bf16.msra.mxu0 0
      %1190 = vmatprep.subr.bf16.mxu0 0
      %1191 = vmatpush1.bf16.msra.mxu0 0
      %1192 = vmatprep.subr.bf16.mxu0 0
      %1193 = vmatpush1.bf16.msra.mxu0 0
      %1194 = vmatprep.subr.bf16.mxu0 0
      %1195 = vmatpush1.bf16.msra.mxu0 0
      %1196 = vmatprep.subr.bf16.mxu0 0
      %1197 = vmatpush1.bf16.msra.mxu0 0
      %1198 = vmatprep.subr.bf16.mxu0 0
      %1199 = vmatpush1.bf16.msra.mxu0 0
      %1200 = vmatprep.subr.bf16.mxu0 0
      %1201 = vmatpush1.bf16.msra.mxu0 0
      %1202 = vmatprep.subr.bf16.mxu0 0
      %1203 = vmatpush1.bf16.msra.mxu0 0
      %1204 = vmatprep.subr.bf16.mxu0 0
      %1205 = vmatpush1.bf16.msra.mxu0 0
      %1206 = vmatprep.mubr.bf16.mxu0 0
      %1207 = vmatmul.mubr.bf16.gmra.mrb[0].mxu0 %v1172
      %v1208 = vpop.f32.mrb[0].mxu0
      %v1209 = vadd.f32 0.0, %v1208
      %v1210 = vpop.f32.mrb[0].mxu0
      %v1211 = vpop.f32.mrb[0].mxu0
      %v1212 = vpop.f32.mrb[0].mxu0
      %1213 = vdwg.mxu0
      %v1214 = vxor.u32 %v1209, 2147483648
      %v1215 = vmul.f32 %v1214, 1.442695
      %v1216 = vpow.pop %v1215
      %v1217 = vadd.f32 %v1216, 1.0
      %v1218 = vrcp.pop %v1217
      %v1219 = vmul.f32 1.0, %v1218
      %v1220 = vmul.f32 %v1209, %v1219
      %v1221 = vpack.c.bf16 %v1220, %v1220
      %v1222 = vld [vmem:[%s9] sm:$0xf]
      %v1223 = vld [vmem:[%s9 + $0x4] sm:$0xf]
      %v1224 = vld [vmem:[%s9 + $0x8] sm:$0xf]
      %v1225 = vld [vmem:[%s9 + $0xc] sm:$0xf]
      %v1226 = vld [vmem:[%s9 + $0x10] sm:$0xf]
      %v1227 = vld [vmem:[%s9 + $0x14] sm:$0xf]
      %v1228 = vld [vmem:[%s9 + $0x18] sm:$0xf]
      %v1229 = vld [vmem:[%s9 + $0x1c] sm:$0xf]
      %v1238 = vunpack.c.l.b16 %v1222
      %v1239 = vunpack.c.l.b16 %v1223
      %v1240 = vunpack.c.l.b16 %v1224
      %v1241 = vunpack.c.l.b16 %v1225
      %v1242 = vunpack.c.l.b16 %v1226
      %v1243 = vunpack.c.l.b16 %v1227
      %v1244 = vunpack.c.l.b16 %v1228
      %v1245 = vunpack.c.l.b16 %v1229
      %v1246 = vpack.c.b16 %v1239, %v1238
      %v1247 = vpack.c.b16 %v1241, %v1240
      %v1248 = vpack.c.b16 %v1243, %v1242
      %v1249 = vpack.c.b16 %v1245, %v1244
      %vm1254 = vcmask 523264
      %v1256 = vsel %vm1254, %v1221, 0
      %1258 = vmatprep.subr.bf16.mxu0 0
      %1259 = vmatpush1.bf16.msra.mxu0 %v1246
      %1260 = vmatprep.subr.bf16.mxu0 0
      %1261 = vmatpush1.bf16.msra.mxu0 %v1247
      %1262 = vmatprep.subr.bf16.mxu0 0
      %1263 = vmatpush1.bf16.msra.mxu0 %v1248
      %1264 = vmatprep.subr.bf16.mxu0 0
      %1265 = vmatpush1.bf16.msra.mxu0 %v1249
      %1266 = vmatprep.subr.bf16.mxu0 0
      %1267 = vmatpush1.bf16.msra.mxu0 0
      %1268 = vmatprep.subr.bf16.mxu0 0
      %1269 = vmatpush1.bf16.msra.mxu0 0
      %1270 = vmatprep.subr.bf16.mxu0 0
      %1271 = vmatpush1.bf16.msra.mxu0 0
      %1272 = vmatprep.subr.bf16.mxu0 0
      %1273 = vmatpush1.bf16.msra.mxu0 0
      %1274 = vmatprep.subr.bf16.mxu0 0
      %1275 = vmatpush1.bf16.msra.mxu0 0
      %1276 = vmatprep.subr.bf16.mxu0 0
      %1277 = vmatpush1.bf16.msra.mxu0 0
      %1278 = vmatprep.subr.bf16.mxu0 0
      %1279 = vmatpush1.bf16.msra.mxu0 0
      %1280 = vmatprep.subr.bf16.mxu0 0
      %1281 = vmatpush1.bf16.msra.mxu0 0
      %1282 = vmatprep.subr.bf16.mxu0 0
      %1283 = vmatpush1.bf16.msra.mxu0 0
      %1284 = vmatprep.subr.bf16.mxu0 0
      %1285 = vmatpush1.bf16.msra.mxu0 0
      %1286 = vmatprep.subr.bf16.mxu0 0
      %1287 = vmatpush1.bf16.msra.mxu0 0
      %1288 = vmatprep.subr.bf16.mxu0 0
      %1289 = vmatpush1.bf16.msra.mxu0 0
      %1290 = vmatprep.mubr.bf16.mxu0 0
      %1291 = vmatmul.mubr.bf16.gmra.mrb[0].mxu0 %v1256
      %v1292 = vpop.f32.mrb[0].mxu0
      %v1293 = vadd.f32 0.0, %v1292
      %v1294 = vpop.f32.mrb[0].mxu0
      %v1295 = vpop.f32.mrb[0].mxu0
      %v1296 = vpop.f32.mrb[0].mxu0
      %1297 = vdwg.mxu0
      %v1298 = vadd.f32 %v1153, %v1293
      %v1299 = vld [vmem:[%s10] sm:$0x1]
      %v1301 = vlaneseq
      %v1302 = vshrl.u32 %v1301, 7
      %v1303 = vsub.s32 0, %v1302
      %v1304 = vrot.slane %v1299, %v1303
      %v1306 = vmul.f32 %v1298, %v1304
      %v1307 = vsel %vm448, %v1306, 0.0
      %1308 = vadd.xlane.f32.xlu0 %v1307
      %v1309 = vpop.xlane.xlu0 %1308
      %v1310 = vtanh.pop %v1309
      %v1311 = vmul.f32 %v1104, 0.125
      %v1312 = vpack.c.bf16 %v1311, %v1311
      %v1314 = vsel %vm384, %v1312, 0
      %1316 = vmatprep.subr.bf16.mxu0 0
      %1317 = vmatpush1.bf16.msra.mxu0 %v552
      %1318 = vmatprep.subr.bf16.mxu0 0
      %1319 = vmatpush1.bf16.msra.mxu0 0
      %1320 = vmatprep.subr.bf16.mxu0 0
      %1321 = vmatpush1.bf16.msra.mxu0 0
      %1322 = vmatprep.subr.bf16.mxu0 0
      %1323 = vmatpush1.bf16.msra.mxu0 0
      %1324 = vmatprep.subr.bf16.mxu0 0
      %1325 = vmatpush1.bf16.msra.mxu0 0
      %1326 = vmatprep.subr.bf16.mxu0 0
      %1327 = vmatpush1.bf16.msra.mxu0 0
      %1328 = vmatprep.subr.bf16.mxu0 0
      %1329 = vmatpush1.bf16.msra.mxu0 0
      %1330 = vmatprep.subr.bf16.mxu0 0
      %1331 = vmatpush1.bf16.msra.mxu0 0
      %1332 = vmatprep.subr.bf16.mxu0 0
      %1333 = vmatpush1.bf16.msra.mxu0 0
      %1334 = vmatprep.subr.bf16.mxu0 0
      %1335 = vmatpush1.bf16.msra.mxu0 0
      %1336 = vmatprep.subr.bf16.mxu0 0
      %1337 = vmatpush1.bf16.msra.mxu0 0
      %1338 = vmatprep.subr.bf16.mxu0 0
      %1339 = vmatpush1.bf16.msra.mxu0 0
      %1340 = vmatprep.subr.bf16.mxu0 0
      %1341 = vmatpush1.bf16.msra.mxu0 0
      %1342 = vmatprep.subr.bf16.mxu0 0
      %1343 = vmatpush1.bf16.msra.mxu0 0
      %1344 = vmatprep.subr.bf16.mxu0 0
      %1345 = vmatpush1.bf16.msra.mxu0 0
      %1346 = vmatprep.subr.bf16.mxu0 0
      %1347 = vmatpush1.bf16.msra.mxu0 0
      %1348 = vmatprep.mubr.bf16.mxu0 0
      %1349 = vmatmul.mubr.bf16.gmra.mrb[0].mxu0 %v1314
      %v1350 = vpop.f32.mrb[0].mxu0
      %v1351 = vadd.f32 0.0, %v1350
      %v1352 = vpop.f32.mrb[0].mxu0
      %v1353 = vpop.f32.mrb[0].mxu0
      %v1354 = vpop.f32.mrb[0].mxu0
      %1355 = vdwg.mxu0
      %v1356 = vsub.f32 %v1351, %v554
      %v1357 = vmul.f32 %v1310, %v1356
      %v1358 = vadd.f32 %v554, %v1357
      %v1359 = vsel %vm448, %v1298, %v1358
      %1360 = vst [vmem:[%s364] sm:$0xff] %v1359
      %p1361 = scmp.lt.s32.totalorder %s22, 1
      %s1362 = scalar_select %p1361, %s22, 1
      %s1363 = smul.addr %s1362, 8
      %s1364 = scalar_lea.vmem %s11, %s1363
      // Predicated region
      $region65: #{enhanced_esa3d_encoder.2} parent=63 // pred_check
        %p1365 = pneg %p271
      $region66: #{enhanced_esa3d_encoder.2} parent=63 // pred_check_branch
        %1367 = sbr.rel (%p1365) target = $region68
      $region67: #{enhanced_esa3d_encoder.2} parent=63 // pred_region
        _
      $region68: #{enhanced_esa3d_encoder.2} parent=63 // pred_fallthru
        _
    $region64: #{enhanced_esa3d_encoder.2} parent=5 // pred_fallthru
      _
    %p1368 = scmp.le.s32.totalorder 2, %s17
    // Predicated region
    $region69: #{enhanced_esa3d_encoder.2} parent=5 // pred_check
      %p1369 = pneg %p1368
    $region70: #{enhanced_esa3d_encoder.2} parent=5 // pred_check_branch
      %1371 = sbr.rel (%p1369) target = $region72
    $region71: #{enhanced_esa3d_encoder.2} parent=5 // pred_region
      %s1372 = ssub.s32 %s17, 2
      // Predicated region
      $region73: #{enhanced_esa3d_encoder.2} parent=71 // pred_check
        %p1373 = pneg %p277
      $region74: #{enhanced_esa3d_encoder.2} parent=71 // pred_check_branch
        %1375 = sbr.rel (%p1373) target = $region76
      $region75: #{enhanced_esa3d_encoder.2} parent=71 // pred_region
        %p1376 = scmp.lt.s32.totalorder %s23, 1
        %s1377 = scalar_select %p1376, %s23, 1
        %s1378 = smul.addr %s1377, 8
        %s1379 = scalar_lea.vmem %s11, %s1378
      $region76: #{enhanced_esa3d_encoder.2} parent=71 // pred_fallthru
        _
    $region72: #{enhanced_esa3d_encoder.2} parent=5 // pred_fallthru
      _
  $region6: #{enhanced_esa3d_encoder.2} parent=0 // loop_footer
    %s21 = sadd.s32 1, %s17
  $region7: #{enhanced_esa3d_encoder.2} parent=0 // loop_footer_branch
    %16 = sbr.rel target = $region3
  $region8: #{enhanced_esa3d_encoder.2} parent=0 // loop_exit
    _

</llo_original>
